<compile_context>
chip_gen: v6e
topology: v6e:2x2x1
jax: 0.10.0
libtpu: 0.0.40
codegen_flags: <defaults>
</compile_context>

<pallas_src>
import itertools
from functools import partial

import numpy as np
import jax
import jax.numpy as jnp
from jax.experimental import pallas as pl
from jax.experimental.pallas import tpu as pltpu


# ----------------------------------------------------------------------------
# global knobs
# ----------------------------------------------------------------------------
MM_DTYPE = jnp.bfloat16      # matmul input/weight dtype (f32 accumulation).
                             # Set to jnp.float32 for bit-closer torch parity.


def _round_up(x, m):
    return (x + m - 1) // m * m


def _pad_to(a, rows, cols):
    r, c = a.shape
    if (r, c) == (rows, cols):
        return a
    return jnp.pad(a, ((0, rows - r), (0, cols - c)))


# ----------------------------------------------------------------------------
# per-generation VMEM sizing
# ----------------------------------------------------------------------------
def _detect_vmem_bytes():
    """Physical per-core VMEM bytes, with a v7x-safe (64 MiB) fallback."""
    try:
        info = pltpu.get_tpu_info()
        for attr in ("vmem_capacity_bytes", "vmem_bytes", "vmem_size_bytes"):
            v = getattr(info, attr, None)
            if v:
                return int(v)
    except Exception:
        pass
    try:
        kind = jax.devices()[0].device_kind.lower()
        if any(t in kind for t in ("v4", "v5", "v6")):
            return 128 * 1024 * 1024
    except Exception:
        pass
    return 64 * 1024 * 1024


_PHYS_VMEM = _detect_vmem_bytes()
_VMEM_LIMIT = min(_PHYS_VMEM * 3 // 4, 100 * 1024 * 1024)   # 96 MiB v5e/v6e, 48 MiB v7x
_VMEM_BUDGET = min(_PHYS_VMEM // 2, 80 * 1024 * 1024)       # 64 MiB v5e/v6e, 32 MiB v7x
_MAX_ROW_TILE = 1024 if _PHYS_VMEM >= 128 * 1024 * 1024 else 512


def _row_tiling(n_rows, per_row_bytes, fixed_bytes):
    """Pick the row tile (multiple of 8, <= _MAX_ROW_TILE).

    `per_row_bytes` must already include the double-buffer factor for the
    pipelined input/output row tiles plus all per-row intermediates;
    `fixed_bytes` is the (single- or double-buffered) weight footprint.
    The budget check applies on every path, and when there are > 8 rows the
    grid is forced to >= 2 steps so both v7x TensorCores get work.
    """
    n8 = _round_up(max(n_rows, 8), 8)
    tm = min(n8, _MAX_ROW_TILE)
    while tm > 8 and fixed_bytes + tm * per_row_bytes > _VMEM_BUDGET:
        tm = max(8, _round_up(tm // 2, 8))
    if n8 > 8 and _round_up(n8, tm) // tm < 2:        # >= 2 grid steps (v7x: 2 TCs)
        tm = min(tm, max(8, _round_up(n8 // 2, 8)))
    n_pad = _round_up(n8, tm)
    return tm, n_pad


# ----------------------------------------------------------------------------
# probes: native erf lowering, single-buffered pinned BlockSpecs
# ----------------------------------------------------------------------------
def _probe_native_erf():
    try:
        def k(x_ref, o_ref):
            o_ref[...] = jax.lax.erf(x_ref[...])
        f = pl.pallas_call(k, out_shape=jax.ShapeDtypeStruct((8, 128), jnp.float32))
        jax.block_until_ready(f(jnp.zeros((8, 128), jnp.float32)))
        return True
    except Exception:
        return False


def _probe_buffered_single():
    """Whether pipeline_mode=pl.Buffered(1) compiles for a pinned BlockSpec."""
    if not hasattr(pl, "Buffered"):
        return False
    try:
        def k(a_ref, w_ref, o_ref):
            o_ref[...] = a_ref[...] + w_ref[...]
        f = pl.pallas_call(
            k, grid=(2,),
            in_specs=[pl.BlockSpec((8, 128), lambda i: (i, 0)),
                      pl.BlockSpec((8, 128), lambda i: (0, 0),
                                   pipeline_mode=pl.Buffered(1))],
            out_specs=pl.BlockSpec((8, 128), lambda i: (i, 0)),
            out_shape=jax.ShapeDtypeStruct((16, 128), jnp.float32))
        jax.block_until_ready(f(jnp.zeros((16, 128), jnp.float32),
                                jnp.zeros((8, 128), jnp.float32)))
        return True
    except Exception:
        return False


_HAS_NATIVE_ERF = _probe_native_erf()
_SINGLE_BUF_PINNED = _probe_buffered_single()
_WEIGHT_BUF_FACTOR = 1 if _SINGLE_BUF_PINNED else 2


def _pinned_spec(shape):
    """Constant-index-map BlockSpec (weights / LN params), single-buffered if possible."""
    if _SINGLE_BUF_PINNED:
        return pl.BlockSpec(shape, lambda i: (0, 0), pipeline_mode=pl.Buffered(1))
    return pl.BlockSpec(shape, lambda i: (0, 0))


# ----------------------------------------------------------------------------
# GELU (erf) -- native erf when it lowers, tanh-based (EUP) fallback
# ----------------------------------------------------------------------------
def _gelu(x):
    if _HAS_NATIVE_ERF:
        return 0.5 * x * (1.0 + jax.lax.erf(x * 0.7071067811865476))
    # TODO(synk): exact-erf GELU needs a native erf lowering; tanh approximation
    # (torch GELU(approximate='tanh'), ~1e-3 abs diff) keeps the transcendental
    # on the otherwise-idle EUP instead of ~10 VALU polynomial ops (v5e).
    c = 0.7978845608028654  # sqrt(2/pi)
    return 0.5 * x * (1.0 + jnp.tanh(c * (x + 0.044715 * x * x * x)))


# ----------------------------------------------------------------------------
# Pallas kernels
# ----------------------------------------------------------------------------
def _mixer_block_kernel(x_ref, g_ref, be_ref, w1_ref, b1_ref, w2_ref, b2_ref,
                        o_ref, *, d_valid):
    """Fused PatchMixerBlock token path: LN -> Linear -> GELU -> Linear -> +residual.

    The feature dim is zero-padded to a multiple of 128; because padded lanes
    of x / gamma / beta / weights / biases are zero, sum(x) and sum(x*x) are
    exact over the true `d_valid` features, the padded lanes of the LN output
    are zero, and the residual keeps padded lanes (and padded rows) zero.
    """
    x = x_ref[...]                                            # (TM, Dp) f32
    inv_d = jnp.float32(1.0 / d_valid)
    s1 = jnp.sum(x, axis=-1, keepdims=True)
    s2 = jnp.sum(x * x, axis=-1, keepdims=True)               # independent reductions
    mean = s1 * inv_d
    var = jnp.maximum(s2 * inv_d - mean * mean, 0.0)          # biased var (torch LN)
    y = (x - mean) * jax.lax.rsqrt(var + 1e-5) * g_ref[...] + be_ref[...]
    h = jnp.dot(y.astype(MM_DTYPE), w1_ref[...],
                preferred_element_type=jnp.float32) + b1_ref[...]
    h = _gelu(h)                                              # f32 elementwise
    z = jnp.dot(h.astype(MM_DTYPE), w2_ref[...],
                preferred_element_type=jnp.float32) + b2_ref[...]
    o_ref[...] = x + z                                        # residual (fold/unfold bijective)


def _linear_kernel(x_ref, w_ref, b_ref, o_ref):
    x = x_ref[...].astype(MM_DTYPE)
    o_ref[...] = jnp.dot(x, w_ref[...], preferred_element_type=jnp.float32) + b_ref[...]


def pallas_mixer_block_group(tokens, blks, d_valid):
    """Apply consecutive mixer blocks that share the token layout.

    tokens: (N, D) f32 (unpadded); blks: padded param dicts (Dp, Hp mult. of 128).
    Tokens are padded once, chained through every block in padded lane form,
    and sliced once (padding is preserved by the kernel).
    """
    N, D = tokens.shape
    Dp, Hp = blks[0]["w1"].shape
    mm_b = jnp.dtype(MM_DTYPE).itemsize
    weight_bytes = 2 * Dp * Hp * mm_b + (Hp + 3 * Dp) * 4
    per_row = (4 * Dp * 4            # in + out row tiles, double-buffered
               + Dp * 4              # LN temporaries (x - mean, normalized)
               + Dp * mm_b           # bf16 cast of LN output
               + Hp * 4              # f32 GELU intermediate
               + Hp * mm_b)          # bf16 cast of GELU output
    tm, n_pad = _row_tiling(N, per_row, _WEIGHT_BUF_FACTOR * weight_bytes)

    x = tokens
    if (n_pad, Dp) != (N, D):
        x = jnp.pad(tokens, ((0, n_pad - N), (0, Dp - D)))
    grid = (n_pad // tm,)
    call = pl.pallas_call(
        partial(_mixer_block_kernel, d_valid=d_valid),
        grid=grid,
        in_specs=[pl.BlockSpec((tm, Dp), lambda i: (i, 0)),   # token rows: tiled
                  _pinned_spec((1, Dp)),                      # gamma
                  _pinned_spec((1, Dp)),                      # beta
                  _pinned_spec((Dp, Hp)),                     # w1
                  _pinned_spec((1, Hp)),                      # b1
                  _pinned_spec((Hp, Dp)),                     # w2
                  _pinned_spec((1, Dp))],                     # b2
        out_specs=pl.BlockSpec((tm, Dp), lambda i: (i, 0)),
        out_shape=jax.ShapeDtypeStruct((n_pad, Dp), jnp.float32),
        compiler_params=pltpu.CompilerParams(
            dimension_semantics=("parallel",),
            vmem_limit_bytes=_VMEM_LIMIT),
        cost_estimate=pl.CostEstimate(
            flops=4 * n_pad * Dp * Hp,
            transcendentals=n_pad * Hp,
            bytes_accessed=2 * n_pad * Dp * 4 + weight_bytes),
    )
    for blk in blks:
        x = call(x, blk["gamma"], blk["beta"], blk["w1"], blk["b1"], blk["w2"], blk["b2"])
    if (n_pad, Dp) != (N, D):
        x = x[:N, :D]
    return x


def pallas_linear(x, w, b, n_out_valid):
    """x: (N, K) f32 (unpadded); w: (Kp, Mp) padded MM_DTYPE; b: (1, Mp) f32."""
    N, K = x.shape
    Kp, Mp = w.shape
    mm_b = jnp.dtype(MM_DTYPE).itemsize
    weight_bytes = Kp * Mp * mm_b + Mp * 4
    per_row = 2 * Kp * 4 + 2 * Mp * 4 + Kp * mm_b
    tm, n_pad = _row_tiling(N, per_row, _WEIGHT_BUF_FACTOR * weight_bytes)
    if (n_pad, Kp) != (N, K):
        x = jnp.pad(x, ((0, n_pad - N), (0, Kp - K)))
    grid = (n_pad // tm,)
    out = pl.pallas_call(
        _linear_kernel,
        grid=grid,
        in_specs=[pl.BlockSpec((tm, Kp), lambda i: (i, 0)),   # rows: tiled
                  _pinned_spec((Kp, Mp)),                     # weight
                  _pinned_spec((1, Mp))],                     # bias
        out_specs=pl.BlockSpec((tm, Mp), lambda i: (i, 0)),
        out_shape=jax.ShapeDtypeStruct((n_pad, Mp), jnp.float32),
        compiler_params=pltpu.CompilerParams(
            dimension_semantics=("parallel",),
            vmem_limit_bytes=_VMEM_LIMIT),
        cost_estimate=pl.CostEstimate(
            flops=2 * n_pad * Kp * Mp,
            transcendentals=0,
            bytes_accessed=n_pad * (Kp + Mp) * 4 + weight_bytes),
    )(x, w, b)
    return out[:N, :n_out_valid]


# ----------------------------------------------------------------------------
# plain-JAX glue (re-indexing only, no hot compute), NHWC layout
# ----------------------------------------------------------------------------
def upsample_bilinear_align_corners_nhwc(x, out_h, out_w):
    """nn.UpsamplingBilinear2d(size=(out_h, out_w)) on NHWC (align_corners=True)."""
    B, H, W, C = x.shape
    if (H, W) == (out_h, out_w):
        return x

    def src(out_size, in_size):
        if out_size == 1:
            return jnp.zeros((1,), jnp.float32)
        return jnp.arange(out_size, dtype=jnp.float32) * ((in_size - 1) / (out_size - 1))

    sy, sx = src(out_h, H), src(out_w, W)
    y0 = jnp.floor(sy); x0 = jnp.floor(sx)
    wy = (sy - y0)[None, :, None, None]
    wx = (sx - x0)[None, None, :, None]
    y0i = y0.astype(jnp.int32); y1i = jnp.minimum(y0i + 1, H - 1)
    x0i = x0.astype(jnp.int32); x1i = jnp.minimum(x0i + 1, W - 1)
    row = x[:, y0i, :, :] * (1.0 - wy) + x[:, y1i, :, :] * wy          # (B,out_h,W,C)
    out = row[:, :, x0i, :] * (1.0 - wx) + row[:, :, x1i, :] * wx      # (B,out_h,out_w,C)
    return out


def unfold_tokens_nhwc(x, ps):
    """torch unfold(kernel=stride=ps)+swapaxes on NHWC -> (B, L, C*ps*ps); feature = c*ps*ps+kh*ps+kw."""
    B, H, W, C = x.shape
    gh, gw = H // ps, W // ps
    y = x.reshape(B, gh, ps, gw, ps, C)
    y = y.transpose(0, 1, 3, 5, 2, 4)                  # (B, gh, gw, C, ps, ps)
    return y.reshape(B, gh * gw, C * ps * ps)


def fold_tokens_nhwc(y, ps, C, H, W):
    """Inverse of unfold_tokens_nhwc (non-overlapping patches)."""
    B = y.shape[0]
    gh, gw = H // ps, W // ps
    y = y.reshape(B, gh, gw, C, ps, ps)
    y = y.transpose(0, 1, 4, 2, 5, 3)                  # (B, gh, ps, gw, ps, C)
    return y.reshape(B, H, W, C)


# ----------------------------------------------------------------------------
# model: parameter init + forward
# ----------------------------------------------------------------------------
def _linear_params(key, fan_in, fan_out):
    kw, kb = jax.random.split(key)
    bound = 1.0 / np.sqrt(fan_in)
    w = jax.random.uniform(kw, (fan_in, fan_out), jnp.float32, -bound, bound)
    b = jax.random.uniform(kb, (1, fan_out), jnp.float32, -bound, bound)
    return w, b


def init_patch_mlp_mixer(key, image_dim, patch_sizes, hidden_channels, num_blocks, num_classes):
    """Mixer/head weights stored pre-padded to 128-lane multiples (MM_DTYPE for matmuls)."""
    C_img, Hd, Wd = image_dim
    target_dim = int(np.prod(patch_sizes))
    params = {}
    key, kc = jax.random.split(key)
    if C_img != hidden_channels:
        # 1x1 conv == per-pixel channel matmul; kept in plain XLA (unpadded) so
        # it fuses with the bilinear resize (perf review: padding K 3->128
        # inflates its HBM traffic ~40x for a purely memory-bound layer).
        params["conv"] = _linear_params(kc, C_img, hidden_channels)
    else:
        params["conv"] = None
    blocks = []
    for _ in range(num_blocks):
        for ps in patch_sizes:
            D = ps * ps * hidden_channels
            Dp, Hp = _round_up(D, 128), _round_up(2 * D, 128)
            key, k1, k2 = jax.random.split(key, 3)
            w1, b1 = _linear_params(k1, D, 2 * D)
            w2, b2 = _linear_params(k2, 2 * D, D)
            blocks.append(dict(
                gamma=_pad_to(jnp.ones((1, D), jnp.float32), 1, Dp),  # LN defaults
                beta=jnp.zeros((1, Dp), jnp.float32),
                w1=_pad_to(w1, Dp, Hp).astype(MM_DTYPE),
                b1=_pad_to(b1, 1, Hp),
                w2=_pad_to(w2, Hp, Dp).astype(MM_DTYPE),
                b2=_pad_to(b2, 1, Dp)))
    params["blocks"] = blocks
    key, kh = jax.random.split(key)
    head_in = target_dim * target_dim * hidden_channels        # == hidden*Hd*Wd (consistent config)
    hw, hb = _linear_params(kh, head_in, num_classes)
    Kp, Mp = _round_up(head_in, 128), _round_up(num_classes, 128)
    params["head"] = (_pad_to(hw, Kp, Mp).astype(MM_DTYPE), _pad_to(hb, 1, Mp))
    return params


def patch_mlp_mixer_forward(x, params, *, image_dim, patch_sizes, hidden_channels, num_classes):
    C_img, Hd, Wd = image_dim
    B = x.shape[0]
    # single NCHW -> NHWC transpose; stay NHWC end-to-end afterwards
    x = jnp.transpose(x.astype(jnp.float32), (0, 2, 3, 1))
    # scaler: UpsamplingBilinear2d to (Hd, Wd)
    x = upsample_bilinear_align_corners_nhwc(x, Hd, Wd)
    # conv1x1 (or Identity) as a fused XLA channel matmul (see init for rationale)
    if params["conv"] is not None:
        cw, cb = params["conv"]
        x = jnp.einsum("bhwc,cd->bhwd", x, cw) + cb
    # mixer blocks: group consecutive blocks sharing a patch size so the
    # unfold/fold and pad/slice glue runs once per group, not per block
    blocks = params["blocks"]
    block_ps = list(itertools.islice(itertools.cycle(patch_sizes), len(blocks)))
    i = 0
    while i < len(blocks):
        ps = block_ps[i]
        j = i
        while j < len(blocks) and block_ps[j] == ps:
            j += 1
        tokens = unfold_tokens_nhwc(x, ps)                     # (B, L, D) re-indexing only
        _, L, D = tokens.shape
        out = pallas_mixer_block_group(tokens.reshape(B * L, D), blocks[i:j], D)
        x = fold_tokens_nhwc(out.reshape(B, L, D), ps, hidden_channels, Hd, Wd)
        i = j
    # classifier head on NCHW-order flatten (matches torch .view(bs, -1))
    flat = jnp.transpose(x, (0, 3, 1, 2)).reshape(B, -1)
    hw, hb = params["head"]
    return pallas_linear(flat, hw, hb, num_classes)


# ----------------------------------------------------------------------------
if __name__ == "__main__":
    # Consistent config: prod(patch_sizes)=8 ==> spatial is 8x8 so that the
    # head's in_features == hidden * H * W (as the PyTorch module implies).
    image_dim = (3, 8, 8)          # (C, H, W) after the bilinear scaler
    patch_sizes = (2, 4)
    hidden_channels = 4
    num_blocks = 2
    num_classes = 10
    batch = 2

    key = jax.random.PRNGKey(0)
    kp, kx = jax.random.split(key)
    params = init_patch_mlp_mixer(kp, image_dim, patch_sizes, hidden_channels,
                                  num_blocks, num_classes)
    # input is 16x16 so the bilinear scaler actually resamples to 8x8
    x = jax.random.normal(kx, (batch, image_dim[0], 16, 16), jnp.float32)

    fwd = jax.jit(lambda inp, p: patch_mlp_mixer_forward(
        inp, p, image_dim=image_dim, patch_sizes=patch_sizes,
        hidden_channels=hidden_channels, num_classes=num_classes))

    logits = jax.block_until_ready(fwd(x, params))
    assert logits.shape == (batch, num_classes)
    assert bool(jnp.all(jnp.isfinite(logits)))
    print("KERNEL_OK")
</pallas_src>

<mosaic_0001>
module attributes {stable_mosaic.version = 11 : i64} {
  func.func @k(%arg0: memref<8x128xf32, #tpu.memory_space<vmem>>, %arg1: memref<8x128xf32, #tpu.memory_space<vmem>>) attributes {dimension_semantics = [], scalar_prefetch = 0 : i64, scratch_operands = 0 : i64, tpu.core_type = #tpu.core_type<tc>} {
    %c0 = arith.constant 0 : index
    %c0_0 = arith.constant 0 : index
    %0 = vector.load %arg0[%c0, %c0_0] : memref<8x128xf32, #tpu.memory_space<vmem>>, vector<8x128xf32>
    %1 = math.erf %0 : vector<8x128xf32>
    %c0_1 = arith.constant 0 : index
    %c0_2 = arith.constant 0 : index
    %2 = vector.load %arg1[%c0_1, %c0_2] : memref<8x128xf32, #tpu.memory_space<vmem>>, vector<8x128xf32>
    tpu.vector_store %arg1[%c0_1, %c0_2], %1 {strides = array<i32>} : memref<8x128xf32, #tpu.memory_space<vmem>>, vector<8x128xf32>,
    return
  }
}

module attributes {stable_mosaic.version = 11 : i64} {
  func.func @k(%arg0: i32, %arg1: memref<8x128xf32, #tpu.memory_space<vmem>>, %arg2: memref<8x128xf32, #tpu.memory_space<vmem>>, %arg3: memref<8x128xf32, #tpu.memory_space<vmem>>) attributes {dimension_semantics = [#tpu.dimension_semantics<arbitrary>], iteration_bounds = array<i64: 2>, scalar_prefetch = 0 : i64, scratch_operands = 0 : i64, tpu.core_type = #tpu.core_type<tc>, window_params = [{transform_indices = @transform_0, window_bounds = array<i64: 8, 128>}, {pipeline_mode = #tpu.pipeline_mode<synchronous>, transform_indices = @transform_1, window_bounds = array<i64: 8, 128>}, {transform_indices = @transform_2, window_bounds = array<i64: 8, 128>}]} {
    %c0 = arith.constant 0 : index
    %c0_0 = arith.constant 0 : index
    %0 = vector.load %arg1[%c0, %c0_0] : memref<8x128xf32, #tpu.memory_space<vmem>>, vector<8x128xf32>
    %c0_1 = arith.constant 0 : index
    %c0_2 = arith.constant 0 : index
    %1 = vector.load %arg2[%c0_1, %c0_2] : memref<8x128xf32, #tpu.memory_space<vmem>>, vector<8x128xf32>
    %2 = arith.addf %0, %1 : vector<8x128xf32>
    %c0_3 = arith.constant 0 : index
    %c0_4 = arith.constant 0 : index
    %3 = vector.load %arg3[%c0_3, %c0_4] : memref<8x128xf32, #tpu.memory_space<vmem>>, vector<8x128xf32>
    tpu.vector_store %arg3[%c0_3, %c0_4], %2 {strides = array<i32>} : memref<8x128xf32, #tpu.memory_space<vmem>>, vector<8x128xf32>,
    return
  }
  func.func @transform_0(%arg0: i32) -> (i32, i32) {
    %c0_i32 = arith.constant 0 : i32
    %c0_i32_0 = arith.constant 0 : i32
    return %arg0, %c0_i32 : i32, i32
  }
  func.func @transform_1(%arg0: i32) -> (i32, i32) {
    %c0_i32 = arith.constant 0 : i32
    %c0_i32_0 = arith.constant 0 : i32
    %c0_i32_1 = arith.constant 0 : i32
    return %c0_i32, %c0_i32_0 : i32, i32
  }
  func.func @transform_2(%arg0: i32) -> (i32, i32) {
    %c0_i32 = arith.constant 0 : i32
    %c0_i32_0 = arith.constant 0 : i32
    return %arg0, %c0_i32 : i32, i32
  }
}

module attributes {stable_mosaic.version = 11 : i64} {
  func.func @_mixer_block_kernel(%arg0: i32, %arg1: memref<16x128xf32, #tpu.memory_space<vmem>>, %arg2: memref<1x128xf32, #tpu.memory_space<vmem>>, %arg3: memref<1x128xf32, #tpu.memory_space<vmem>>, %arg4: memref<128x128xbf16, #tpu.memory_space<vmem>>, %arg5: memref<1x128xf32, #tpu.memory_space<vmem>>, %arg6: memref<128x128xbf16, #tpu.memory_space<vmem>>, %arg7: memref<1x128xf32, #tpu.memory_space<vmem>>, %arg8: memref<16x128xf32, #tpu.memory_space<vmem>>) attributes {dimension_semantics = [#tpu.dimension_semantics<parallel>], iteration_bounds = array<i64: 2>, scalar_prefetch = 0 : i64, scratch_operands = 0 : i64, tpu.core_type = #tpu.core_type<tc>, window_params = [{transform_indices = @transform_0, window_bounds = array<i64: 16, 128>}, {pipeline_mode = #tpu.pipeline_mode<synchronous>, transform_indices = @transform_1, window_bounds = array<i64: 1, 128>}, {pipeline_mode = #tpu.pipeline_mode<synchronous>, transform_indices = @transform_2, window_bounds = array<i64: 1, 128>}, {pipeline_mode = #tpu.pipeline_mode<synchronous>, transform_indices = @transform_3, window_bounds = array<i64: 128, 128>}, {pipeline_mode = #tpu.pipeline_mode<synchronous>, transform_indices = @transform_4, window_bounds = array<i64: 1, 128>}, {pipeline_mode = #tpu.pipeline_mode<synchronous>, transform_indices = @transform_5, window_bounds = array<i64: 128, 128>}, {pipeline_mode = #tpu.pipeline_mode<synchronous>, transform_indices = @transform_6, window_bounds = array<i64: 1, 128>}, {transform_indices = @transform_7, window_bounds = array<i64: 16, 128>}]} {
    %c0 = arith.constant 0 : index
    %c0_0 = arith.constant 0 : index
    %0 = vector.load %arg1[%c0, %c0_0] : memref<16x128xf32, #tpu.memory_space<vmem>>, vector<16x128xf32>
    %cst = arith.constant dense<0.000000e+00> : vector<16xf32>
    %1 = vector.multi_reduction <add>, %0, %cst [1] : vector<16x128xf32> to vector<16xf32>
    %2 = vector.shape_cast %1 : vector<16xf32> to vector<16x1xf32>
    %3 = arith.mulf %0, %0 : vector<16x128xf32>
    %cst_1 = arith.constant dense<0.000000e+00> : vector<16xf32>
    %4 = vector.multi_reduction <add>, %3, %cst_1 [1] : vector<16x128xf32> to vector<16xf32>
    %5 = vector.shape_cast %4 : vector<16xf32> to vector<16x1xf32>
    %cst_2 = arith.constant 6.250000e-02 : f32
    %6 = vector.broadcast %cst_2 : f32 to vector<16x1xf32>
    %7 = arith.mulf %2, %6 : vector<16x1xf32>
    %cst_3 = arith.constant 6.250000e-02 : f32
    %8 = vector.broadcast %cst_3 : f32 to vector<16x1xf32>
    %9 = arith.mulf %5, %8 : vector<16x1xf32>
    %10 = arith.mulf %7, %7 : vector<16x1xf32>
    %11 = arith.subf %9, %10 : vector<16x1xf32>
    %cst_4 = arith.constant 0.000000e+00 : f32
    %12 = vector.broadcast %cst_4 : f32 to vector<16x1xf32>
    %13 = arith.maximumf %11, %12 : vector<16x1xf32>
    %14 = vector.broadcast %7 : vector<16x1xf32> to vector<16x128xf32>
    %15 = arith.subf %0, %14 : vector<16x128xf32>
    %cst_5 = arith.constant 9.99999974E-6 : f32
    %16 = vector.broadcast %cst_5 : f32 to vector<16x1xf32>
    %17 = arith.addf %13, %16 : vector<16x1xf32>
    %18 = math.rsqrt %17 : vector<16x1xf32>
    %19 = vector.broadcast %18 : vector<16x1xf32> to vector<16x128xf32>
    %20 = arith.mulf %15, %19 : vector<16x128xf32>
    %c0_6 = arith.constant 0 : index
    %c0_7 = arith.constant 0 : index
    %21 = vector.load %arg2[%c0_6, %c0_7] : memref<1x128xf32, #tpu.memory_space<vmem>>, vector<1x128xf32>
    %22 = vector.broadcast %21 : vector<1x128xf32> to vector<16x128xf32>
    %23 = arith.mulf %20, %22 : vector<16x128xf32>
    %c0_8 = arith.constant 0 : index
    %c0_9 = arith.constant 0 : index
    %24 = vector.load %arg3[%c0_8, %c0_9] : memref<1x128xf32, #tpu.memory_space<vmem>>, vector<1x128xf32>
    %25 = vector.broadcast %24 : vector<1x128xf32> to vector<16x128xf32>
    %26 = arith.addf %23, %25 : vector<16x128xf32>
    %27 = arith.truncf %26 : vector<16x128xf32> to vector<16x128xbf16>
    %c0_10 = arith.constant 0 : index
    %c0_11 = arith.constant 0 : index
    %28 = vector.load %arg4[%c0_10, %c0_11] : memref<128x128xbf16, #tpu.memory_space<vmem>>, vector<128x128xbf16>
    %cst_12 = arith.constant dense<0.000000e+00> : vector<16x128xf32>
    %29 = tpu.matmul %27, %28, %cst_12 {dimension_numbers = #tpu.dot_dimension_numbers<[1], [0], [0], [1], [0, 0, 1, 1], [], []>} : vector<16x128xbf16>, vector<128x128xbf16>, vector<16x128xf32> -> vector<16x128xf32>
    %c0_13 = arith.constant 0 : index
    %c0_14 = arith.constant 0 : index
    %30 = vector.load %arg5[%c0_13, %c0_14] : memref<1x128xf32, #tpu.memory_space<vmem>>, vector<1x128xf32>
    %31 = vector.broadcast %30 : vector<1x128xf32> to vector<16x128xf32>
    %32 = arith.addf %29, %31 : vector<16x128xf32>
    %cst_15 = arith.constant 5.000000e-01 : f32
    %33 = vector.broadcast %cst_15 : f32 to vector<16x128xf32>
    %34 = arith.mulf %33, %32 : vector<16x128xf32>
    %cst_16 = arith.constant 4.471500e-02 : f32
    %35 = vector.broadcast %cst_16 : f32 to vector<16x128xf32>
    %36 = arith.mulf %35, %32 : vector<16x128xf32>
    %37 = arith.mulf %36, %32 : vector<16x128xf32>
    %38 = arith.mulf %37, %32 : vector<16x128xf32>
    %39 = arith.addf %32, %38 : vector<16x128xf32>
    %cst_17 = arith.constant 0.797884583 : f32
    %40 = vector.broadcast %cst_17 : f32 to vector<16x128xf32>
    %41 = arith.mulf %40, %39 : vector<16x128xf32>
    %42 = math.tanh %41 : vector<16x128xf32>
    %cst_18 = arith.constant 1.000000e+00 : f32
    %43 = vector.broadcast %cst_18 : f32 to vector<16x128xf32>
    %44 = arith.addf %43, %42 : vector<16x128xf32>
    %45 = arith.mulf %34, %44 : vector<16x128xf32>
    %46 = arith.truncf %45 : vector<16x128xf32> to vector<16x128xbf16>
    %c0_19 = arith.constant 0 : index
    %c0_20 = arith.constant 0 : index
    %47 = vector.load %arg6[%c0_19, %c0_20] : memref<128x128xbf16, #tpu.memory_space<vmem>>, vector<128x128xbf16>
    %cst_21 = arith.constant dense<0.000000e+00> : vector<16x128xf32>
    %48 = tpu.matmul %46, %47, %cst_21 {dimension_numbers = #tpu.dot_dimension_numbers<[1], [0], [0], [1], [0, 0, 1, 1], [], []>} : vector<16x128xbf16>, vector<128x128xbf16>, vector<16x128xf32> -> vector<16x128xf32>
    %c0_22 = arith.constant 0 : index
    %c0_23 = arith.constant 0 : index
    %49 = vector.load %arg7[%c0_22, %c0_23] : memref<1x128xf32, #tpu.memory_space<vmem>>, vector<1x128xf32>
    %50 = vector.broadcast %49 : vector<1x128xf32> to vector<16x128xf32>
    %51 = arith.addf %48, %50 : vector<16x128xf32>
    %52 = arith.addf %0, %51 : vector<16x128xf32>
    %c0_24 = arith.constant 0 : index
    %c0_25 = arith.constant 0 : index
    %53 = vector.load %arg8[%c0_24, %c0_25] : memref<16x128xf32, #tpu.memory_space<vmem>>, vector<16x128xf32>
    tpu.vector_store %arg8[%c0_24, %c0_25], %52 {strides = array<i32>} : memref<16x128xf32, #tpu.memory_space<vmem>>, vector<16x128xf32>,
    return
  }
  func.func @transform_0(%arg0: i32) -> (i32, i32) {
    %c0_i32 = arith.constant 0 : i32
    %c0_i32_0 = arith.constant 0 : i32
    return %arg0, %c0_i32 : i32, i32
  }
  func.func @transform_1(%arg0: i32) -> (i32, i32) {
    %c0_i32 = arith.constant 0 : i32
    %c0_i32_0 = arith.constant 0 : i32
    %c0_i32_1 = arith.constant 0 : i32
    return %c0_i32, %c0_i32_0 : i32, i32
  }
  func.func @transform_2(%arg0: i32) -> (i32, i32) {
    %c0_i32 = arith.constant 0 : i32
    %c0_i32_0 = arith.constant 0 : i32
    %c0_i32_1 = arith.constant 0 : i32
    return %c0_i32, %c0_i32_0 : i32, i32
  }
  func.func @transform_3(%arg0: i32) -> (i32, i32) {
    %c0_i32 = arith.constant 0 : i32
    %c0_i32_0 = arith.constant 0 : i32
    %c0_i32_1 = arith.constant 0 : i32
    return %c0_i32, %c0_i32_0 : i32, i32
  }
  func.func @transform_4(%arg0: i32) -> (i32, i32) {
    %c0_i32 = arith.constant 0 : i32
    %c0_i32_0 = arith.constant 0 : i32
    %c0_i32_1 = arith.constant 0 : i32
    return %c0_i32, %c0_i32_0 : i32, i32
  }
  func.func @transform_5(%arg0: i32) -> (i32, i32) {
    %c0_i32 = arith.constant 0 : i32
    %c0_i32_0 = arith.constant 0 : i32
    %c0_i32_1 = arith.constant 0 : i32
    return %c0_i32, %c0_i32_0 : i32, i32
  }
  func.func @transform_6(%arg0: i32) -> (i32, i32) {
    %c0_i32 = arith.constant 0 : i32
    %c0_i32_0 = arith.constant 0 : i32
    %c0_i32_1 = arith.constant 0 : i32
    return %c0_i32, %c0_i32_0 : i32, i32
  }
  func.func @transform_7(%arg0: i32) -> (i32, i32) {
    %c0_i32 = arith.constant 0 : i32
    %c0_i32_0 = arith.constant 0 : i32
    return %arg0, %c0_i32 : i32, i32
  }
}

module attributes {stable_mosaic.version = 11 : i64} {
  func.func @_mixer_block_kernel(%arg0: i32, %arg1: memref<8x128xf32, #tpu.memory_space<vmem>>, %arg2: memref<1x128xf32, #tpu.memory_space<vmem>>, %arg3: memref<1x128xf32, #tpu.memory_space<vmem>>, %arg4: memref<128x128xbf16, #tpu.memory_space<vmem>>, %arg5: memref<1x128xf32, #tpu.memory_space<vmem>>, %arg6: memref<128x128xbf16, #tpu.memory_space<vmem>>, %arg7: memref<1x128xf32, #tpu.memory_space<vmem>>, %arg8: memref<8x128xf32, #tpu.memory_space<vmem>>) attributes {dimension_semantics = [#tpu.dimension_semantics<parallel>], iteration_bounds = array<i64: 1>, scalar_prefetch = 0 : i64, scratch_operands = 0 : i64, tpu.core_type = #tpu.core_type<tc>, window_params = [{transform_indices = @transform_0, window_bounds = array<i64: 8, 128>}, {pipeline_mode = #tpu.pipeline_mode<synchronous>, transform_indices = @transform_1, window_bounds = array<i64: 1, 128>}, {pipeline_mode = #tpu.pipeline_mode<synchronous>, transform_indices = @transform_2, window_bounds = array<i64: 1, 128>}, {pipeline_mode = #tpu.pipeline_mode<synchronous>, transform_indices = @transform_3, window_bounds = array<i64: 128, 128>}, {pipeline_mode = #tpu.pipeline_mode<synchronous>, transform_indices = @transform_4, window_bounds = array<i64: 1, 128>}, {pipeline_mode = #tpu.pipeline_mode<synchronous>, transform_indices = @transform_5, window_bounds = array<i64: 128, 128>}, {pipeline_mode = #tpu.pipeline_mode<synchronous>, transform_indices = @transform_6, window_bounds = array<i64: 1, 128>}, {transform_indices = @transform_7, window_bounds = array<i64: 8, 128>}]} {
    %c0 = arith.constant 0 : index
    %c0_0 = arith.constant 0 : index
    %0 = vector.load %arg1[%c0, %c0_0] : memref<8x128xf32, #tpu.memory_space<vmem>>, vector<8x128xf32>
    %cst = arith.constant dense<0.000000e+00> : vector<8xf32>
    %1 = vector.multi_reduction <add>, %0, %cst [1] : vector<8x128xf32> to vector<8xf32>
    %2 = vector.shape_cast %1 : vector<8xf32> to vector<8x1xf32>
    %3 = arith.mulf %0, %0 : vector<8x128xf32>
    %cst_1 = arith.constant dense<0.000000e+00> : vector<8xf32>
    %4 = vector.multi_reduction <add>, %3, %cst_1 [1] : vector<8x128xf32> to vector<8xf32>
    %5 = vector.shape_cast %4 : vector<8xf32> to vector<8x1xf32>
    %cst_2 = arith.constant 1.562500e-02 : f32
    %6 = vector.broadcast %cst_2 : f32 to vector<8x1xf32>
    %7 = arith.mulf %2, %6 : vector<8x1xf32>
    %cst_3 = arith.constant 1.562500e-02 : f32
    %8 = vector.broadcast %cst_3 : f32 to vector<8x1xf32>
    %9 = arith.mulf %5, %8 : vector<8x1xf32>
    %10 = arith.mulf %7, %7 : vector<8x1xf32>
    %11 = arith.subf %9, %10 : vector<8x1xf32>
    %cst_4 = arith.constant 0.000000e+00 : f32
    %12 = vector.broadcast %cst_4 : f32 to vector<8x1xf32>
    %13 = arith.maximumf %11, %12 : vector<8x1xf32>
    %14 = vector.broadcast %7 : vector<8x1xf32> to vector<8x128xf32>
    %15 = arith.subf %0, %14 : vector<8x128xf32>
    %cst_5 = arith.constant 9.99999974E-6 : f32
    %16 = vector.broadcast %cst_5 : f32 to vector<8x1xf32>
    %17 = arith.addf %13, %16 : vector<8x1xf32>
    %18 = math.rsqrt %17 : vector<8x1xf32>
    %19 = vector.broadcast %18 : vector<8x1xf32> to vector<8x128xf32>
    %20 = arith.mulf %15, %19 : vector<8x128xf32>
    %c0_6 = arith.constant 0 : index
    %c0_7 = arith.constant 0 : index
    %21 = vector.load %arg2[%c0_6, %c0_7] : memref<1x128xf32, #tpu.memory_space<vmem>>, vector<1x128xf32>
    %22 = vector.broadcast %21 : vector<1x128xf32> to vector<8x128xf32>
    %23 = arith.mulf %20, %22 : vector<8x128xf32>
    %c0_8 = arith.constant 0 : index
    %c0_9 = arith.constant 0 : index
    %24 = vector.load %arg3[%c0_8, %c0_9] : memref<1x128xf32, #tpu.memory_space<vmem>>, vector<1x128xf32>
    %25 = vector.broadcast %24 : vector<1x128xf32> to vector<8x128xf32>
    %26 = arith.addf %23, %25 : vector<8x128xf32>
    %27 = arith.truncf %26 : vector<8x128xf32> to vector<8x128xbf16>
    %c0_10 = arith.constant 0 : index
    %c0_11 = arith.constant 0 : index
    %28 = vector.load %arg4[%c0_10, %c0_11] : memref<128x128xbf16, #tpu.memory_space<vmem>>, vector<128x128xbf16>
    %cst_12 = arith.constant dense<0.000000e+00> : vector<8x128xf32>
    %29 = tpu.matmul %27, %28, %cst_12 {dimension_numbers = #tpu.dot_dimension_numbers<[1], [0], [0], [1], [0, 0, 1, 1], [], []>} : vector<8x128xbf16>, vector<128x128xbf16>, vector<8x128xf32> -> vector<8x128xf32>
    %c0_13 = arith.constant 0 : index
    %c0_14 = arith.constant 0 : index
    %30 = vector.load %arg5[%c0_13, %c0_14] : memref<1x128xf32, #tpu.memory_space<vmem>>, vector<1x128xf32>
    %31 = vector.broadcast %30 : vector<1x128xf32> to vector<8x128xf32>
    %32 = arith.addf %29, %31 : vector<8x128xf32>
    %cst_15 = arith.constant 5.000000e-01 : f32
    %33 = vector.broadcast %cst_15 : f32 to vector<8x128xf32>
    %34 = arith.mulf %33, %32 : vector<8x128xf32>
    %cst_16 = arith.constant 4.471500e-02 : f32
    %35 = vector.broadcast %cst_16 : f32 to vector<8x128xf32>
    %36 = arith.mulf %35, %32 : vector<8x128xf32>
    %37 = arith.mulf %36, %32 : vector<8x128xf32>
    %38 = arith.mulf %37, %32 : vector<8x128xf32>
    %39 = arith.addf %32, %38 : vector<8x128xf32>
    %cst_17 = arith.constant 0.797884583 : f32
    %40 = vector.broadcast %cst_17 : f32 to vector<8x128xf32>
    %41 = arith.mulf %40, %39 : vector<8x128xf32>
    %42 = math.tanh %41 : vector<8x128xf32>
    %cst_18 = arith.constant 1.000000e+00 : f32
    %43 = vector.broadcast %cst_18 : f32 to vector<8x128xf32>
    %44 = arith.addf %43, %42 : vector<8x128xf32>
    %45 = arith.mulf %34, %44 : vector<8x128xf32>
    %46 = arith.truncf %45 : vector<8x128xf32> to vector<8x128xbf16>
    %c0_19 = arith.constant 0 : index
    %c0_20 = arith.constant 0 : index
    %47 = vector.load %arg6[%c0_19, %c0_20] : memref<128x128xbf16, #tpu.memory_space<vmem>>, vector<128x128xbf16>
    %cst_21 = arith.constant dense<0.000000e+00> : vector<8x128xf32>
    %48 = tpu.matmul %46, %47, %cst_21 {dimension_numbers = #tpu.dot_dimension_numbers<[1], [0], [0], [1], [0, 0, 1, 1], [], []>} : vector<8x128xbf16>, vector<128x128xbf16>, vector<8x128xf32> -> vector<8x128xf32>
    %c0_22 = arith.constant 0 : index
    %c0_23 = arith.constant 0 : index
    %49 = vector.load %arg7[%c0_22, %c0_23] : memref<1x128xf32, #tpu.memory_space<vmem>>, vector<1x128xf32>
    %50 = vector.broadcast %49 : vector<1x128xf32> to vector<8x128xf32>
    %51 = arith.addf %48, %50 : vector<8x128xf32>
    %52 = arith.addf %0, %51 : vector<8x128xf32>
    %c0_24 = arith.constant 0 : index
    %c0_25 = arith.constant 0 : index
    %53 = vector.load %arg8[%c0_24, %c0_25] : memref<8x128xf32, #tpu.memory_space<vmem>>, vector<8x128xf32>
    tpu.vector_store %arg8[%c0_24, %c0_25], %52 {strides = array<i32>} : memref<8x128xf32, #tpu.memory_space<vmem>>, vector<8x128xf32>,
    return
  }
  func.func @transform_0(%arg0: i32) -> (i32, i32) {
    %c0_i32 = arith.constant 0 : i32
    %c0_i32_0 = arith.constant 0 : i32
    return %arg0, %c0_i32 : i32, i32
  }
  func.func @transform_1(%arg0: i32) -> (i32, i32) {
    %c0_i32 = arith.constant 0 : i32
    %c0_i32_0 = arith.constant 0 : i32
    %c0_i32_1 = arith.constant 0 : i32
    return %c0_i32, %c0_i32_0 : i32, i32
  }
  func.func @transform_2(%arg0: i32) -> (i32, i32) {
    %c0_i32 = arith.constant 0 : i32
    %c0_i32_0 = arith.constant 0 : i32
    %c0_i32_1 = arith.constant 0 : i32
    return %c0_i32, %c0_i32_0 : i32, i32
  }
  func.func @transform_3(%arg0: i32) -> (i32, i32) {
    %c0_i32 = arith.constant 0 : i32
    %c0_i32_0 = arith.constant 0 : i32
    %c0_i32_1 = arith.constant 0 : i32
    return %c0_i32, %c0_i32_0 : i32, i32
  }
  func.func @transform_4(%arg0: i32) -> (i32, i32) {
    %c0_i32 = arith.constant 0 : i32
    %c0_i32_0 = arith.constant 0 : i32
    %c0_i32_1 = arith.constant 0 : i32
    return %c0_i32, %c0_i32_0 : i32, i32
  }
  func.func @transform_5(%arg0: i32) -> (i32, i32) {
    %c0_i32 = arith.constant 0 : i32
    %c0_i32_0 = arith.constant 0 : i32
    %c0_i32_1 = arith.constant 0 : i32
    return %c0_i32, %c0_i32_0 : i32, i32
  }
  func.func @transform_6(%arg0: i32) -> (i32, i32) {
    %c0_i32 = arith.constant 0 : i32
    %c0_i32_0 = arith.constant 0 : i32
    %c0_i32_1 = arith.constant 0 : i32
    return %c0_i32, %c0_i32_0 : i32, i32
  }
  func.func @transform_7(%arg0: i32) -> (i32, i32) {
    %c0_i32 = arith.constant 0 : i32
    %c0_i32_0 = arith.constant 0 : i32
    return %arg0, %c0_i32 : i32, i32
  }
}

module attributes {stable_mosaic.version = 11 : i64} {
  func.func @_linear_kernel(%arg0: i32, %arg1: memref<8x256xf32, #tpu.memory_space<vmem>>, %arg2: memref<256x128xbf16, #tpu.memory_space<vmem>>, %arg3: memref<1x128xf32, #tpu.memory_space<vmem>>, %arg4: memref<8x128xf32, #tpu.memory_space<vmem>>) attributes {dimension_semantics = [#tpu.dimension_semantics<parallel>], iteration_bounds = array<i64: 1>, scalar_prefetch = 0 : i64, scratch_operands = 0 : i64, tpu.core_type = #tpu.core_type<tc>, window_params = [{transform_indices = @transform_0, window_bounds = array<i64: 8, 256>}, {pipeline_mode = #tpu.pipeline_mode<synchronous>, transform_indices = @transform_1, window_bounds = array<i64: 256, 128>}, {pipeline_mode = #tpu.pipeline_mode<synchronous>, transform_indices = @transform_2, window_bounds = array<i64: 1, 128>}, {transform_indices = @transform_3, window_bounds = array<i64: 8, 128>}]} {
    %c0 = arith.constant 0 : index
    %c0_0 = arith.constant 0 : index
    %0 = vector.load %arg1[%c0, %c0_0] : memref<8x256xf32, #tpu.memory_space<vmem>>, vector<8x256xf32>
    %1 = arith.truncf %0 : vector<8x256xf32> to vector<8x256xbf16>
    %c0_1 = arith.constant 0 : index
    %c0_2 = arith.constant 0 : index
    %2 = vector.load %arg2[%c0_1, %c0_2] : memref<256x128xbf16, #tpu.memory_space<vmem>>, vector<256x128xbf16>
    %cst = arith.constant dense<0.000000e+00> : vector<8x128xf32>
    %3 = tpu.matmul %1, %2, %cst {dimension_numbers = #tpu.dot_dimension_numbers<[1], [0], [0], [1], [0, 0, 1, 1], [], []>} : vector<8x256xbf16>, vector<256x128xbf16>, vector<8x128xf32> -> vector<8x128xf32>
    %c0_3 = arith.constant 0 : index
    %c0_4 = arith.constant 0 : index
    %4 = vector.load %arg3[%c0_3, %c0_4] : memref<1x128xf32, #tpu.memory_space<vmem>>, vector<1x128xf32>
    %5 = vector.broadcast %4 : vector<1x128xf32> to vector<8x128xf32>
    %6 = arith.addf %3, %5 : vector<8x128xf32>
    %c0_5 = arith.constant 0 : index
    %c0_6 = arith.constant 0 : index
    %7 = vector.load %arg4[%c0_5, %c0_6] : memref<8x128xf32, #tpu.memory_space<vmem>>, vector<8x128xf32>
    tpu.vector_store %arg4[%c0_5, %c0_6], %6 {strides = array<i32>} : memref<8x128xf32, #tpu.memory_space<vmem>>, vector<8x128xf32>,
    return
  }
  func.func @transform_0(%arg0: i32) -> (i32, i32) {
    %c0_i32 = arith.constant 0 : i32
    %c0_i32_0 = arith.constant 0 : i32
    return %arg0, %c0_i32 : i32, i32
  }
  func.func @transform_1(%arg0: i32) -> (i32, i32) {
    %c0_i32 = arith.constant 0 : i32
    %c0_i32_0 = arith.constant 0 : i32
    %c0_i32_1 = arith.constant 0 : i32
    return %c0_i32, %c0_i32_0 : i32, i32
  }
  func.func @transform_2(%arg0: i32) -> (i32, i32) {
    %c0_i32 = arith.constant 0 : i32
    %c0_i32_0 = arith.constant 0 : i32
    %c0_i32_1 = arith.constant 0 : i32
    return %c0_i32, %c0_i32_0 : i32, i32
  }
  func.func @transform_3(%arg0: i32) -> (i32, i32) {
    %c0_i32 = arith.constant 0 : i32
    %c0_i32_0 = arith.constant 0 : i32
    return %arg0, %c0_i32 : i32, i32
  }
}

</mosaic_0001>

<llo_original>
// kernel: tpu_custom_call.1
$region0: #{tpu_custom_call.1}
  #allocation0 [shape = 'u32[]', space=smem, size = 0x4, offset = 0x4, fixed_abs, tag = 'smem constant byte address 0x4 - core index']
  #allocation1 [shape = 'u32[144,128]{1,0:T(1,128)}', space=vmem, size = 0x12000, scoped, tag = 'internal scratch']
  %s0 = inlined_call_operand.hbm [shape: f32[8,128], index: 0, kind: input, shape index: {}]
  %s1 = inlined_call_operand.hbm [shape: f32[8,128], index: 1, kind: output, shape index: {}]
  %s2 = sld [smem:[#allocation0]]
  $region18: #{tpu_custom_call.1} parent=0
    _
  %s4 = ssub.s32 1, %s2
  %s5 = scalar_select 0, %s4, %s2
  $region1: #{tpu_custom_call.1} parent=0
    #allocation2 [shape = 'u8[4096]{0}', space=vmem, size = 0x1000, scoped, tag = 'input window, operand 0, single buffered']
    #allocation3 [shape = 's32[1]{0}', space=sflag, size = 0x4, scoped, tag = 'scoped memory for tpu_custom_call.1']
    #allocation4 [shape = 's32[1]{0}', space=sflag, size = 0x4, scoped, tag = 'scoped memory for tpu_custom_call.1']
    #allocation5 [shape = 'u8[4096]{0}', space=vmem, size = 0x1000, scoped, tag = 'output window, operand 0, single buffered']
    %6 = vsyncpa [#allocation3], 0
    %7 = vsyncpa [#allocation4], 0
    // Predicated region
    $region2: #{tpu_custom_call.1} parent=1 // pred_check
      _
    $region3: #{tpu_custom_call.1} parent=1 // pred_check_branch
      %9 = sbr.rel (0) target = $region5
    $region4: #{tpu_custom_call.1} parent=1 // pred_region
      %s11 = ssub.s32 128, 128
      %12 = vsyncadd [#allocation3], %s11
      %s14 = sshll.u32 [#allocation2], 4
      %s15 = int_to_ptr.vmem [resolvable:$true] %s14
      %17 = dma.hbm_to_vmem [thread:$0]  %s0, 128, %s15, [#allocation3]
    $region5: #{tpu_custom_call.1} parent=1 // pred_fallthru
      _
    // Predicated region
    $region6: #{tpu_custom_call.1} parent=1 // pred_check
      _
    $region7: #{tpu_custom_call.1} parent=1 // pred_check_branch
      %19 = sbr.rel (0) target = $region9
    $region8: #{tpu_custom_call.1} parent=1 // pred_region
      %20 = dma.done [#allocation3], 128
    $region9: #{tpu_custom_call.1} parent=1 // pred_fallthru
      _
    %v21 = vld [vmem:[#allocation2] sm:$0xff]
    %v22 = verf.f32.pop %v21
    %23 = vst [vmem:[#allocation5] sm:$0xff] %v22
    // Predicated region
    $region10: #{tpu_custom_call.1} parent=1 // pred_check
      _
    $region11: #{tpu_custom_call.1} parent=1 // pred_check_branch
      %25 = sbr.rel (0) target = $region13
    $region12: #{tpu_custom_call.1} parent=1 // pred_region
      %s27 = ssub.s32 128, 128
      %28 = vsyncadd [#allocation4], %s27
      %s30 = sshll.u32 [#allocation5], 4
      %s31 = int_to_ptr.vmem [resolvable:$true] %s30
      %33 = dma.vmem_to_hbm [thread:$0]  %s31, 128, %s1, [#allocation4]
    $region13: #{tpu_custom_call.1} parent=1 // pred_fallthru
      _
    // Predicated region
    $region14: #{tpu_custom_call.1} parent=1 // pred_check
      _
    $region15: #{tpu_custom_call.1} parent=1 // pred_check_branch
      %35 = sbr.rel (0) target = $region17
    $region16: #{tpu_custom_call.1} parent=1 // pred_region
      %36 = dma.done [#allocation4], 128
    $region17: #{tpu_custom_call.1} parent=1 // pred_fallthru
      _
    %37 = vsyncpa [#allocation3], 1
    %38 = vsyncpa [#allocation4], 1

// kernel: tpu_custom_call.1
$region0: #{tpu_custom_call.1}
  #allocation0 [shape = 'u32[]', space=smem, size = 0x4, offset = 0x4, fixed_abs, tag = 'smem constant byte address 0x4 - core index']
  #allocation1 [shape = 'u32[144,128]{1,0:T(1,128)}', space=vmem, size = 0x12000, scoped, tag = 'internal scratch']
  %s0 = inlined_call_operand.hbm [shape: f32[16,128], index: 0, kind: input, shape index: {}]
  %s1 = inlined_call_operand.hbm [shape: f32[8,128], index: 1, kind: input, shape index: {}]
  %s2 = inlined_call_operand.hbm [shape: f32[16,128], index: 2, kind: output, shape index: {}]
  %s3 = sld [smem:[#allocation0]]
  $region49: #{tpu_custom_call.1} parent=0
    _
  %s5 = ssub.s32 1, %s3
  %s6 = scalar_select 0, %s5, %s3
  $region1: #{tpu_custom_call.1} parent=0
    #allocation2 [shape = 'u8[8192]{0}', space=vmem, size = 0x2000, scoped, tag = 'input window, operand 0']
    #allocation3 [shape = 's32[2]{0}', space=sflag, size = 0x8, scoped, tag = 'scoped memory for tpu_custom_call.1']
    #allocation4 [shape = 's32[2]{0}', space=sflag, size = 0x8, scoped, tag = 'scoped memory for tpu_custom_call.1']
    #allocation5 [shape = 'u8[4096]{0}', space=vmem, size = 0x1000, scoped, tag = 'input window, operand 1, single buffered']
    #allocation6 [shape = 's32[1]{0}', space=sflag, size = 0x4, scoped, tag = 'scoped memory for tpu_custom_call.1']
    #allocation7 [shape = 'u8[8192]{0}', space=vmem, size = 0x2000, scoped, tag = 'output window, operand 0']
    %7 = vsyncpa [#allocation3], 0
    %s8 = scalar_lea.sflag [#allocation3], 1
    %9 = vsyncpa %s8, 0
    %10 = vsyncpa [#allocation6], 0
    %11 = vsyncpa [#allocation4], 0
    %s12 = scalar_lea.sflag [#allocation4], 1
    %13 = vsyncpa %s12, 0
    loop: start=0, step=1, limit=4
    $region2: #{tpu_custom_call.1} parent=1 // loop_pre_header
      _
    $region3: #{tpu_custom_call.1} parent=1 // loop_header
      %s15 = sphi 0, %s19
      %p16 = scmp.ge.s32.totalorder %s15, 4
      %s25 = sphi 0, %s27
      %s28 = sphi 0, %s25
      %s29 = sphi 0, %s28
      %s45 = sphi 0, %s29
      %s49 = sphi 0, %s49
      %s51 = sphi 0, %s49
      %s52 = sphi 0, %s51
      %s66 = sphi 0, %s52
      %s72 = sphi 0, %s74
      %s75 = sphi 0, %s72
      %s76 = sphi 0, %s75
      %s92 = sphi 0, %s76
    $region4: #{tpu_custom_call.1} parent=1 // loop_header_branch
      %18 = sbr.rel (%p16) target = $region8
    $region5: #{tpu_custom_call.1} parent=1 // loop_body
      %s20 = ssub.s32 %s15, 1
      %s21 = ssub.s32 %s15, 2
      %s22 = sadd.s32 %s15, 1
      %s23 = ssub.s32 %s15, %s22
      %p24 = scmp.eq.s32.totalorder %s23, 0
      %s26 = sadd.s32 %s25, 1
      %s27 = scalar_select %p24, %s25, %s26
      %p30 = pneg %p24
      %p31 = scmp.eq.s32.totalorder %s15, 1
      %p32 = por %p30, %p31
      %p33 = scmp.ne.s32.totalorder %s25, %s28
      %p34 = scmp.eq.s32.totalorder %s15, 0
      %p35 = por %p33, %p34
      %p36 = scmp.ne.s32.totalorder %s25, %s28
      %p37 = scmp.eq.s32.totalorder %s20, 1
      %p38 = por %p36, %p37
      %p39 = scmp.ne.s32.totalorder %s28, %s29
      %p40 = scmp.eq.s32.totalorder %s20, 0
      %p41 = por %p39, %p40
      %p42 = scmp.ne.s32.totalorder %s28, %s29
      %p43 = scmp.eq.s32.totalorder %s21, 1
      %p44 = por %p42, %p43
      %p46 = scmp.ne.s32.totalorder %s29, %s45
      %p47 = scmp.eq.s32.totalorder %s21, 0
      %p48 = por %p46, %p47
      %s50 = sadd.s32 %s49, 1
      %p53 = scmp.eq.s32.totalorder %s15, 1
      %p54 = scmp.ne.s32.totalorder %s49, %s51
      %p55 = scmp.eq.s32.totalorder %s15, 0
      %p56 = por %p54, %p55
      %p57 = scmp.ne.s32.totalorder %s49, %s51
      %p58 = scmp.eq.s32.totalorder %s20, 1
      %p59 = por %p57, %p58
      %p60 = scmp.ne.s32.totalorder %s51, %s52
      %p61 = scmp.eq.s32.totalorder %s20, 0
      %p62 = por %p60, %p61
      %p63 = scmp.ne.s32.totalorder %s51, %s52
      %p64 = scmp.eq.s32.totalorder %s21, 1
      %p65 = por %p63, %p64
      %p67 = scmp.ne.s32.totalorder %s52, %s66
      %p68 = scmp.eq.s32.totalorder %s21, 0
      %p69 = por %p67, %p68
      %s70 = ssub.s32 %s15, %s22
      %p71 = scmp.eq.s32.totalorder %s70, 0
      %s73 = sadd.s32 %s72, 1
      %s74 = scalar_select %p71, %s72, %s73
      %p77 = pneg %p71
      %p78 = scmp.eq.s32.totalorder %s15, 1
      %p79 = por %p77, %p78
      %p80 = scmp.ne.s32.totalorder %s72, %s75
      %p81 = scmp.eq.s32.totalorder %s15, 0
      %p82 = por %p80, %p81
      %p83 = scmp.ne.s32.totalorder %s72, %s75
      %p84 = scmp.eq.s32.totalorder %s20, 1
      %p85 = por %p83, %p84
      %p86 = scmp.ne.s32.totalorder %s75, %s76
      %p87 = scmp.eq.s32.totalorder %s20, 0
      %p88 = por %p86, %p87
      %p89 = scmp.ne.s32.totalorder %s75, %s76
      %p90 = scmp.eq.s32.totalorder %s21, 1
      %p91 = por %p89, %p90
      %p93 = scmp.ne.s32.totalorder %s76, %s92
      %p94 = scmp.eq.s32.totalorder %s21, 0
      %p95 = por %p93, %p94
      %p96 = scmp.le.s32.totalorder 1, %s15
      %p97 = scmp.lt.s32.totalorder %s15, 3
      %p98 = pnand %p96, %p97
      %p99 = pneg %p98
      // Predicated region
      $region9: #{tpu_custom_call.1} parent=5 // pred_check
        _
      $region10: #{tpu_custom_call.1} parent=5 // pred_check_branch
        %101 = sbr.rel (%p98) target = $region12
      $region11: #{tpu_custom_call.1} parent=5 // pred_region
        %s102 = ssub.s32 %s15, 1
        // Predicated region
        $region13: #{tpu_custom_call.1} parent=11 // pred_check
          %p103 = pneg %p62
        $region14: #{tpu_custom_call.1} parent=11 // pred_check_branch
          %105 = sbr.rel (%p103) target = $region16
        $region15: #{tpu_custom_call.1} parent=11 // pred_region
          %s107 = ssub.s32 128, 128
          %108 = vsyncadd [#allocation6], %s107
          %s110 = sshll.u32 [#allocation5], 4
          %s111 = int_to_ptr.vmem [resolvable:$true] %s110
          %113 = dma.hbm_to_vmem [thread:$0]  %s1, 128, %s111, [#allocation6]
        $region16: #{tpu_custom_call.1} parent=11 // pred_fallthru
          _
      $region12: #{tpu_custom_call.1} parent=5 // pred_fallthru
        _
      %p114 = scmp.lt.s32.totalorder %s15, 2
      // Predicated region
      $region17: #{tpu_custom_call.1} parent=5 // pred_check
        %p115 = pneg %p114
      $region18: #{tpu_custom_call.1} parent=5 // pred_check_branch
        %117 = sbr.rel (%p115) target = $region20
      $region19: #{tpu_custom_call.1} parent=5 // pred_region
        // Predicated region
        $region21: #{tpu_custom_call.1} parent=19 // pred_check
          %p118 = pneg %p35
        $region22: #{tpu_custom_call.1} parent=19 // pred_check_branch
          %120 = sbr.rel (%p118) target = $region24
        $region23: #{tpu_custom_call.1} parent=19 // pred_region
          %s121 = sand.u32 %s25, 1
          %s122 = scalar_lea.sflag [#allocation3], %s121
          %s123 = sand.u32 %s25, 1
          %s124 = smul.addr %s123, 8
          %s125 = scalar_lea.vmem [#allocation2], %s124
          %s127 = ssub.s32 128, 128
          %128 = vsyncadd %s122, %s127
          %s129 = smul.addr %s15, 128
          %s130 = scalar_lea.hbm %s0, %s129
          %s132 = sshll.u32 %s125, 4
          %s133 = int_to_ptr.vmem [resolvable:$true] %s132
          %135 = dma.hbm_to_vmem [thread:$0]  %s130, 128, %s133, %s122
        $region24: #{tpu_custom_call.1} parent=19 // pred_fallthru
          _
      $region20: #{tpu_custom_call.1} parent=5 // pred_fallthru
        _
      %p136 = scmp.le.s32.totalorder 1, %s15
      %p137 = scmp.lt.s32.totalorder %s15, 3
      %p138 = pnand %p136, %p137
      %p139 = pneg %p138
      // Predicated region
      $region25: #{tpu_custom_call.1} parent=5 // pred_check
        _
      $region26: #{tpu_custom_call.1} parent=5 // pred_check_branch
        %141 = sbr.rel (%p138) target = $region28
      $region27: #{tpu_custom_call.1} parent=5 // pred_region
        %s142 = ssub.s32 %s15, 1
        %s143 = sand.u32 %s28, 1
        %s144 = scalar_lea.sflag [#allocation3], %s143
        %s145 = sand.u32 %s28, 1
        %s146 = smul.addr %s145, 8
        %s147 = scalar_lea.vmem [#allocation2], %s146
        // Predicated region
        $region29: #{tpu_custom_call.1} parent=27 // pred_check
          %p148 = pneg %p41
        $region30: #{tpu_custom_call.1} parent=27 // pred_check_branch
          %150 = sbr.rel (%p148) target = $region32
        $region31: #{tpu_custom_call.1} parent=27 // pred_region
          %151 = dma.done %s144, 128
        $region32: #{tpu_custom_call.1} parent=27 // pred_fallthru
          _
        // Predicated region
        $region33: #{tpu_custom_call.1} parent=27 // pred_check
          %p152 = pneg %p62
        $region34: #{tpu_custom_call.1} parent=27 // pred_check_branch
          %154 = sbr.rel (%p152) target = $region36
        $region35: #{tpu_custom_call.1} parent=27 // pred_region
          %155 = dma.done [#allocation6], 128
        $region36: #{tpu_custom_call.1} parent=27 // pred_fallthru
          _
        %s156 = sand.u32 %s28, 1
        %s157 = scalar_lea.sflag [#allocation3], %s156
        %s158 = sand.u32 %s28, 1
        %s159 = smul.addr %s158, 8
        %s160 = scalar_lea.vmem [#allocation2], %s159
        %p161 = pneg %p41
        %p162 = pneg %p38
        %p163 = pneg %p62
        %p164 = pneg %p59
        %p165 = pneg %p88
        %p166 = pneg %p85
        %s167 = sand.u32 %s75, 1
        %s168 = scalar_lea.sflag [#allocation4], %s167
        %s169 = sand.u32 %s75, 1
        %s170 = smul.addr %s169, 8
        %s171 = scalar_lea.vmem [#allocation7], %s170
        %v172 = vld [vmem:[%s147] sm:$0xff]
        %v173 = vld [vmem:[#allocation5] sm:$0xff]
        %v174 = vadd.f32 %v172, %v173
        %175 = vst [vmem:[%s171] sm:$0xff] %v174
        %s176 = sand.u32 %s75, 1
        %s177 = scalar_lea.sflag [#allocation4], %s176
        %s178 = sand.u32 %s75, 1
        %s179 = smul.addr %s178, 8
        %s180 = scalar_lea.vmem [#allocation7], %s179
        // Predicated region
        $region37: #{tpu_custom_call.1} parent=27 // pred_check
          %p181 = pneg %p85
        $region38: #{tpu_custom_call.1} parent=27 // pred_check_branch
          %183 = sbr.rel (%p181) target = $region40
        $region39: #{tpu_custom_call.1} parent=27 // pred_region
          %s185 = ssub.s32 128, 128
          %186 = vsyncadd %s177, %s185
          %s187 = smul.addr %s20, 128
          %s188 = scalar_lea.hbm %s2, %s187
          %s190 = sshll.u32 %s180, 4
          %s191 = int_to_ptr.vmem [resolvable:$true] %s190
          %193 = dma.vmem_to_hbm [thread:$0]  %s191, 128, %s188, %s177
        $region40: #{tpu_custom_call.1} parent=27 // pred_fallthru
          _
      $region28: #{tpu_custom_call.1} parent=5 // pred_fallthru
        _
      %p194 = scmp.le.s32.totalorder 2, %s15
      // Predicated region
      $region41: #{tpu_custom_call.1} parent=5 // pred_check
        %p195 = pneg %p194
      $region42: #{tpu_custom_call.1} parent=5 // pred_check_branch
        %197 = sbr.rel (%p195) target = $region44
      $region43: #{tpu_custom_call.1} parent=5 // pred_region
        %s198 = ssub.s32 %s15, 2
        // Predicated region
        $region45: #{tpu_custom_call.1} parent=43 // pred_check
          %p199 = pneg %p91
        $region46: #{tpu_custom_call.1} parent=43 // pred_check_branch
          %201 = sbr.rel (%p199) target = $region48
        $region47: #{tpu_custom_call.1} parent=43 // pred_region
          %s202 = sand.u32 %s76, 1
          %s203 = scalar_lea.sflag [#allocation4], %s202
          %s204 = sand.u32 %s76, 1
          %s205 = smul.addr %s204, 8
          %s206 = scalar_lea.vmem [#allocation7], %s205
          %207 = dma.done %s203, 128
        $region48: #{tpu_custom_call.1} parent=43 // pred_fallthru
          _
      $region44: #{tpu_custom_call.1} parent=5 // pred_fallthru
        _
    $region6: #{tpu_custom_call.1} parent=1 // loop_footer
      %s19 = sadd.s32 1, %s15
    $region7: #{tpu_custom_call.1} parent=1 // loop_footer_branch
      %14 = sbr.rel target = $region3
    $region8: #{tpu_custom_call.1} parent=1 // loop_exit
      _
    %208 = vsyncpa [#allocation3], 1
    %s209 = scalar_lea.sflag [#allocation3], 1
    %210 = vsyncpa %s209, 1
    %211 = vsyncpa [#allocation6], 1
    %212 = vsyncpa [#allocation4], 1
    %s213 = scalar_lea.sflag [#allocation4], 1
    %214 = vsyncpa %s213, 1

// kernel: _lambda_.5
$region0: #{_lambda_.5}
  #allocation0 [shape = 'u32[]', space=smem, size = 0x4, offset = 0x4, fixed_abs, tag = 'smem constant byte address 0x4 - core index']
  #allocation1 [shape = 'u32[144,128]{1,0:T(1,128)}', space=vmem, size = 0x12000, scoped, tag = 'internal scratch']
  %s0 = inlined_call_operand.vmem [shape: f32[32,128], index: 0, kind: input, shape index: {}]
  %s1 = inlined_call_operand.vmem [shape: f32[1,128], index: 1, kind: input, shape index: {}]
  %s2 = inlined_call_operand.vmem [shape: f32[1,128], index: 2, kind: input, shape index: {}]
  %s3 = inlined_call_operand.vmem [shape: bf16[128,128], index: 3, kind: input, shape index: {}]
  %s4 = inlined_call_operand.vmem [shape: f32[1,128], index: 4, kind: input, shape index: {}]
  %s5 = inlined_call_operand.vmem [shape: bf16[128,128], index: 5, kind: input, shape index: {}]
  %s6 = inlined_call_operand.vmem [shape: f32[1,128], index: 6, kind: input, shape index: {}]
  %s7 = inlined_call_operand.vmem [shape: f32[32,128], index: 7, kind: output, shape index: {}]
  %s8 = sld [smem:[#allocation0]]
  $region61: #{_lambda_.5} parent=0
    _
  %s10 = ssub.s32 1, %s8
  %s11 = scalar_select 0, %s10, %s8
  loop: start=0, step=1, limit=4
  $region2: #{_lambda_.5} parent=0 // loop_pre_header
    _
  $region3: #{_lambda_.5} parent=0 // loop_header
    %s13 = sphi 0, %s17
    %p14 = scmp.ge.s32.totalorder %s13, 4
    %s23 = sphi 0, %s25
    %s26 = sphi 0, %s23
    %s27 = sphi 0, %s26
    %s43 = sphi 0, %s27
    %s47 = sphi 0, %s47
    %s49 = sphi 0, %s47
    %s50 = sphi 0, %s49
    %s64 = sphi 0, %s50
    %s68 = sphi 0, %s68
    %s70 = sphi 0, %s68
    %s71 = sphi 0, %s70
    %s85 = sphi 0, %s71
    %s89 = sphi 0, %s89
    %s91 = sphi 0, %s89
    %s92 = sphi 0, %s91
    %s106 = sphi 0, %s92
    %s110 = sphi 0, %s110
    %s112 = sphi 0, %s110
    %s113 = sphi 0, %s112
    %s127 = sphi 0, %s113
    %s131 = sphi 0, %s131
    %s133 = sphi 0, %s131
    %s134 = sphi 0, %s133
    %s148 = sphi 0, %s134
    %s152 = sphi 0, %s152
    %s154 = sphi 0, %s152
    %s155 = sphi 0, %s154
    %s169 = sphi 0, %s155
    %s175 = sphi 0, %s177
    %s178 = sphi 0, %s175
    %s179 = sphi 0, %s178
    %s195 = sphi 0, %s179
  $region4: #{_lambda_.5} parent=0 // loop_header_branch
    %16 = sbr.rel (%p14) target = $region8
  $region5: #{_lambda_.5} parent=0 // loop_body
    %s18 = ssub.s32 %s13, 1
    %s19 = ssub.s32 %s13, 2
    %s20 = sadd.s32 %s13, 1
    %s21 = ssub.s32 %s13, %s20
    %p22 = scmp.eq.s32.totalorder %s21, 0
    %s24 = sadd.s32 %s23, 1
    %s25 = scalar_select %p22, %s23, %s24
    %p28 = pneg %p22
    %p29 = scmp.eq.s32.totalorder %s13, 1
    %p30 = por %p28, %p29
    %p31 = scmp.ne.s32.totalorder %s23, %s26
    %p32 = scmp.eq.s32.totalorder %s13, 0
    %p33 = por %p31, %p32
    %p34 = scmp.ne.s32.totalorder %s23, %s26
    %p35 = scmp.eq.s32.totalorder %s18, 1
    %p36 = por %p34, %p35
    %p37 = scmp.ne.s32.totalorder %s26, %s27
    %p38 = scmp.eq.s32.totalorder %s18, 0
    %p39 = por %p37, %p38
    %p40 = scmp.ne.s32.totalorder %s26, %s27
    %p41 = scmp.eq.s32.totalorder %s19, 1
    %p42 = por %p40, %p41
    %p44 = scmp.ne.s32.totalorder %s27, %s43
    %p45 = scmp.eq.s32.totalorder %s19, 0
    %p46 = por %p44, %p45
    %s48 = sadd.s32 %s47, 1
    %p51 = scmp.eq.s32.totalorder %s13, 1
    %p52 = scmp.ne.s32.totalorder %s47, %s49
    %p53 = scmp.eq.s32.totalorder %s13, 0
    %p54 = por %p52, %p53
    %p55 = scmp.ne.s32.totalorder %s47, %s49
    %p56 = scmp.eq.s32.totalorder %s18, 1
    %p57 = por %p55, %p56
    %p58 = scmp.ne.s32.totalorder %s49, %s50
    %p59 = scmp.eq.s32.totalorder %s18, 0
    %p60 = por %p58, %p59
    %p61 = scmp.ne.s32.totalorder %s49, %s50
    %p62 = scmp.eq.s32.totalorder %s19, 1
    %p63 = por %p61, %p62
    %p65 = scmp.ne.s32.totalorder %s50, %s64
    %p66 = scmp.eq.s32.totalorder %s19, 0
    %p67 = por %p65, %p66
    %s69 = sadd.s32 %s68, 1
    %p72 = scmp.eq.s32.totalorder %s13, 1
    %p73 = scmp.ne.s32.totalorder %s68, %s70
    %p74 = scmp.eq.s32.totalorder %s13, 0
    %p75 = por %p73, %p74
    %p76 = scmp.ne.s32.totalorder %s68, %s70
    %p77 = scmp.eq.s32.totalorder %s18, 1
    %p78 = por %p76, %p77
    %p79 = scmp.ne.s32.totalorder %s70, %s71
    %p80 = scmp.eq.s32.totalorder %s18, 0
    %p81 = por %p79, %p80
    %p82 = scmp.ne.s32.totalorder %s70, %s71
    %p83 = scmp.eq.s32.totalorder %s19, 1
    %p84 = por %p82, %p83
    %p86 = scmp.ne.s32.totalorder %s71, %s85
    %p87 = scmp.eq.s32.totalorder %s19, 0
    %p88 = por %p86, %p87
    %s90 = sadd.s32 %s89, 1
    %p93 = scmp.eq.s32.totalorder %s13, 1
    %p94 = scmp.ne.s32.totalorder %s89, %s91
    %p95 = scmp.eq.s32.totalorder %s13, 0
    %p96 = por %p94, %p95
    %p97 = scmp.ne.s32.totalorder %s89, %s91
    %p98 = scmp.eq.s32.totalorder %s18, 1
    %p99 = por %p97, %p98
    %p100 = scmp.ne.s32.totalorder %s91, %s92
    %p101 = scmp.eq.s32.totalorder %s18, 0
    %p102 = por %p100, %p101
    %p103 = scmp.ne.s32.totalorder %s91, %s92
    %p104 = scmp.eq.s32.totalorder %s19, 1
    %p105 = por %p103, %p104
    %p107 = scmp.ne.s32.totalorder %s92, %s106
    %p108 = scmp.eq.s32.totalorder %s19, 0
    %p109 = por %p107, %p108
    %s111 = sadd.s32 %s110, 1
    %p114 = scmp.eq.s32.totalorder %s13, 1
    %p115 = scmp.ne.s32.totalorder %s110, %s112
    %p116 = scmp.eq.s32.totalorder %s13, 0
    %p117 = por %p115, %p116
    %p118 = scmp.ne.s32.totalorder %s110, %s112
    %p119 = scmp.eq.s32.totalorder %s18, 1
    %p120 = por %p118, %p119
    %p121 = scmp.ne.s32.totalorder %s112, %s113
    %p122 = scmp.eq.s32.totalorder %s18, 0
    %p123 = por %p121, %p122
    %p124 = scmp.ne.s32.totalorder %s112, %s113
    %p125 = scmp.eq.s32.totalorder %s19, 1
    %p126 = por %p124, %p125
    %p128 = scmp.ne.s32.totalorder %s113, %s127
    %p129 = scmp.eq.s32.totalorder %s19, 0
    %p130 = por %p128, %p129
    %s132 = sadd.s32 %s131, 1
    %p135 = scmp.eq.s32.totalorder %s13, 1
    %p136 = scmp.ne.s32.totalorder %s131, %s133
    %p137 = scmp.eq.s32.totalorder %s13, 0
    %p138 = por %p136, %p137
    %p139 = scmp.ne.s32.totalorder %s131, %s133
    %p140 = scmp.eq.s32.totalorder %s18, 1
    %p141 = por %p139, %p140
    %p142 = scmp.ne.s32.totalorder %s133, %s134
    %p143 = scmp.eq.s32.totalorder %s18, 0
    %p144 = por %p142, %p143
    %p145 = scmp.ne.s32.totalorder %s133, %s134
    %p146 = scmp.eq.s32.totalorder %s19, 1
    %p147 = por %p145, %p146
    %p149 = scmp.ne.s32.totalorder %s134, %s148
    %p150 = scmp.eq.s32.totalorder %s19, 0
    %p151 = por %p149, %p150
    %s153 = sadd.s32 %s152, 1
    %p156 = scmp.eq.s32.totalorder %s13, 1
    %p157 = scmp.ne.s32.totalorder %s152, %s154
    %p158 = scmp.eq.s32.totalorder %s13, 0
    %p159 = por %p157, %p158
    %p160 = scmp.ne.s32.totalorder %s152, %s154
    %p161 = scmp.eq.s32.totalorder %s18, 1
    %p162 = por %p160, %p161
    %p163 = scmp.ne.s32.totalorder %s154, %s155
    %p164 = scmp.eq.s32.totalorder %s18, 0
    %p165 = por %p163, %p164
    %p166 = scmp.ne.s32.totalorder %s154, %s155
    %p167 = scmp.eq.s32.totalorder %s19, 1
    %p168 = por %p166, %p167
    %p170 = scmp.ne.s32.totalorder %s155, %s169
    %p171 = scmp.eq.s32.totalorder %s19, 0
    %p172 = por %p170, %p171
    %s173 = ssub.s32 %s13, %s20
    %p174 = scmp.eq.s32.totalorder %s173, 0
    %s176 = sadd.s32 %s175, 1
    %s177 = scalar_select %p174, %s175, %s176
    %p180 = pneg %p174
    %p181 = scmp.eq.s32.totalorder %s13, 1
    %p182 = por %p180, %p181
    %p183 = scmp.ne.s32.totalorder %s175, %s178
    %p184 = scmp.eq.s32.totalorder %s13, 0
    %p185 = por %p183, %p184
    %p186 = scmp.ne.s32.totalorder %s175, %s178
    %p187 = scmp.eq.s32.totalorder %s18, 1
    %p188 = por %p186, %p187
    %p189 = scmp.ne.s32.totalorder %s178, %s179
    %p190 = scmp.eq.s32.totalorder %s18, 0
    %p191 = por %p189, %p190
    %p192 = scmp.ne.s32.totalorder %s178, %s179
    %p193 = scmp.eq.s32.totalorder %s19, 1
    %p194 = por %p192, %p193
    %p196 = scmp.ne.s32.totalorder %s179, %s195
    %p197 = scmp.eq.s32.totalorder %s19, 0
    %p198 = por %p196, %p197
    %p199 = scmp.le.s32.totalorder 1, %s13
    %p200 = scmp.lt.s32.totalorder %s13, 3
    %p201 = pnand %p199, %p200
    %p202 = pneg %p201
    // Predicated region
    $region9: #{_lambda_.5} parent=5 // pred_check
      _
    $region10: #{_lambda_.5} parent=5 // pred_check_branch
      %204 = sbr.rel (%p201) target = $region12
    $region11: #{_lambda_.5} parent=5 // pred_region
      %s205 = ssub.s32 %s13, 1
      // Predicated region
      $region13: #{_lambda_.5} parent=11 // pred_check
        %p206 = pneg %p60
      $region14: #{_lambda_.5} parent=11 // pred_check_branch
        %208 = sbr.rel (%p206) target = $region16
      $region15: #{_lambda_.5} parent=11 // pred_region
        _
      $region16: #{_lambda_.5} parent=11 // pred_fallthru
        _
      // Predicated region
      $region17: #{_lambda_.5} parent=11 // pred_check
        %p209 = pneg %p81
      $region18: #{_lambda_.5} parent=11 // pred_check_branch
        %211 = sbr.rel (%p209) target = $region20
      $region19: #{_lambda_.5} parent=11 // pred_region
        _
      $region20: #{_lambda_.5} parent=11 // pred_fallthru
        _
      // Predicated region
      $region21: #{_lambda_.5} parent=11 // pred_check
        %p212 = pneg %p102
      $region22: #{_lambda_.5} parent=11 // pred_check_branch
        %214 = sbr.rel (%p212) target = $region24
      $region23: #{_lambda_.5} parent=11 // pred_region
        _
      $region24: #{_lambda_.5} parent=11 // pred_fallthru
        _
      // Predicated region
      $region25: #{_lambda_.5} parent=11 // pred_check
        %p215 = pneg %p123
      $region26: #{_lambda_.5} parent=11 // pred_check_branch
        %217 = sbr.rel (%p215) target = $region28
      $region27: #{_lambda_.5} parent=11 // pred_region
        _
      $region28: #{_lambda_.5} parent=11 // pred_fallthru
        _
      // Predicated region
      $region29: #{_lambda_.5} parent=11 // pred_check
        %p218 = pneg %p144
      $region30: #{_lambda_.5} parent=11 // pred_check_branch
        %220 = sbr.rel (%p218) target = $region32
      $region31: #{_lambda_.5} parent=11 // pred_region
        _
      $region32: #{_lambda_.5} parent=11 // pred_fallthru
        _
      // Predicated region
      $region33: #{_lambda_.5} parent=11 // pred_check
        %p221 = pneg %p165
      $region34: #{_lambda_.5} parent=11 // pred_check_branch
        %223 = sbr.rel (%p221) target = $region36
      $region35: #{_lambda_.5} parent=11 // pred_region
        _
      $region36: #{_lambda_.5} parent=11 // pred_fallthru
        _
    $region12: #{_lambda_.5} parent=5 // pred_fallthru
      _
    %p224 = scmp.lt.s32.totalorder %s13, 2
    // Predicated region
    $region37: #{_lambda_.5} parent=5 // pred_check
      %p225 = pneg %p224
    $region38: #{_lambda_.5} parent=5 // pred_check_branch
      %227 = sbr.rel (%p225) target = $region40
    $region39: #{_lambda_.5} parent=5 // pred_region
      // Predicated region
      $region41: #{_lambda_.5} parent=39 // pred_check
        %p228 = pneg %p33
      $region42: #{_lambda_.5} parent=39 // pred_check_branch
        %230 = sbr.rel (%p228) target = $region44
      $region43: #{_lambda_.5} parent=39 // pred_region
        %s231 = smul.u32 2, %s13
        %p232 = scmp.lt.s32.totalorder %s231, 3
        %s233 = scalar_select %p232, %s231, 3
        %s234 = smul.addr %s233, 8
        %s235 = scalar_lea.vmem %s0, %s234
        %s236 = smul.u32 2, %s13
      $region44: #{_lambda_.5} parent=39 // pred_fallthru
        _
    $region40: #{_lambda_.5} parent=5 // pred_fallthru
      _
    %p237 = scmp.le.s32.totalorder 1, %s13
    %p238 = scmp.lt.s32.totalorder %s13, 3
    %p239 = pnand %p237, %p238
    %p240 = pneg %p239
    // Predicated region
    $region45: #{_lambda_.5} parent=5 // pred_check
      _
    $region46: #{_lambda_.5} parent=5 // pred_check_branch
      %242 = sbr.rel (%p239) target = $region48
    $region47: #{_lambda_.5} parent=5 // pred_region
      %s243 = ssub.s32 %s13, 1
      %s244 = smul.u32 2, %s18
      %p245 = scmp.lt.s32.totalorder %s244, 3
      %s246 = scalar_select %p245, %s244, 3
      %s247 = smul.addr %s246, 8
      %s248 = scalar_lea.vmem %s0, %s247
      %p249 = pneg %p39
      %p250 = pneg %p36
      %p251 = pneg %p60
      %p252 = pneg %p57
      %p253 = pneg %p81
      %p254 = pneg %p78
      %p255 = pneg %p102
      %p256 = pneg %p99
      %p257 = pneg %p123
      %p258 = pneg %p120
      %p259 = pneg %p144
      %p260 = pneg %p141
      %p261 = pneg %p165
      %p262 = pneg %p162
      %p263 = pneg %p191
      %p264 = pneg %p188
      %s265 = smul.u32 2, %s18
      %p266 = scmp.lt.s32.totalorder %s265, 3
      %s267 = scalar_select %p266, %s265, 3
      %s268 = smul.addr %s267, 8
      %s269 = scalar_lea.vmem %s7, %s268
      %s270 = smul.u32 2, %s18
      %p271 = scmp.lt.s32.totalorder %s270, 3
      %s272 = scalar_select %p271, %s270, 3
      %s273 = smul.addr %s272, 8
      %s274 = scalar_lea.vmem %s0, %s273
      %s275 = smul.u32 2, %s18
      %s276 = smul.u32 2, %s18
      %p277 = scmp.lt.s32.totalorder %s276, 3
      %s278 = scalar_select %p277, %s276, 3
      %s279 = smul.addr %s278, 8
      %s280 = scalar_lea.vmem %s7, %s279
      %s281 = smul.u32 2, %s18
      %v283 = vld [vmem:[%s274] sm:$0xff]
      %v284 = vld [vmem:[%s274 + $0x8] sm:$0xff]
      %285 = vadd.xlane.f32.xlu0 %v283
      %v286 = vpop.xlane.xlu0 %285
      %287 = vadd.xlane.f32.xlu0 %v284
      %v288 = vpop.xlane.xlu0 %287
      %v289 = vmul.f32 %v283, %v283
      %v290 = vmul.f32 %v284, %v284
      %291 = vadd.xlane.f32.xlu0 %v289
      %v292 = vpop.xlane.xlu0 %291
      %293 = vadd.xlane.f32.xlu0 %v290
      %v294 = vpop.xlane.xlu0 %293
      %v295 = vmul.f32 %v286, 0.0625
      %v296 = vmul.f32 %v288, 0.0625
      %v297 = vmul.f32 %v292, 0.0625
      %v298 = vmul.f32 %v294, 0.0625
      %v299 = vmul.f32 %v295, %v295
      %v300 = vmul.f32 %v296, %v296
      %v301 = vsub.f32 %v297, %v299
      %v302 = vsub.f32 %v298, %v300
      %v303 = vmax.f32 %v301, 0.0
      %v304 = vmax.f32 %v302, 0.0
      %v305 = vsub.f32 %v283, %v295
      %v306 = vsub.f32 %v284, %v296
      %v307 = vadd.f32 %v303, 1e-05
      %v308 = vadd.f32 %v304, 1e-05
      %v309 = vrsqrt.pop %v307
      %v310 = vrsqrt.pop %v308
      %v311 = vmul.f32 %v305, %v309
      %v312 = vmul.f32 %v306, %v310
      %v313 = vld [vmem:[%s1] sm:$0x1]
      %v315 = vlaneseq
      %v316 = vshrl.u32 %v315, 7
      %v317 = vsub.s32 0, %v316
      %v318 = vrot.slane %v313, %v317
      %v320 = vmul.f32 %v311, %v318
      %v321 = vmul.f32 %v312, %v318
      %v322 = vld [vmem:[%s2] sm:$0x1]
      %v324 = vlaneseq
      %v325 = vshrl.u32 %v324, 7
      %v326 = vsub.s32 0, %v325
      %v327 = vrot.slane %v322, %v326
      %v329 = vadd.f32 %v320, %v327
      %v330 = vadd.f32 %v321, %v327
      %v331 = vpack.c.bf16 %v330, %v329
      %v332 = vld [vmem:[%s3] sm:$0xf]
      %v333 = vld [vmem:[%s3 + $0x4] sm:$0xf]
      %v334 = vld [vmem:[%s3 + $0x8] sm:$0xf]
      %v335 = vld [vmem:[%s3 + $0xc] sm:$0xf]
      %v336 = vld [vmem:[%s3 + $0x10] sm:$0xf]
      %v337 = vld [vmem:[%s3 + $0x14] sm:$0xf]
      %v338 = vld [vmem:[%s3 + $0x18] sm:$0xf]
      %v339 = vld [vmem:[%s3 + $0x1c] sm:$0xf]
      %v340 = vld [vmem:[%s3 + $0x20] sm:$0xf]
      %v341 = vld [vmem:[%s3 + $0x24] sm:$0xf]
      %v342 = vld [vmem:[%s3 + $0x28] sm:$0xf]
      %v343 = vld [vmem:[%s3 + $0x2c] sm:$0xf]
      %v344 = vld [vmem:[%s3 + $0x30] sm:$0xf]
      %v345 = vld [vmem:[%s3 + $0x34] sm:$0xf]
      %v346 = vld [vmem:[%s3 + $0x38] sm:$0xf]
      %v347 = vld [vmem:[%s3 + $0x3c] sm:$0xf]
      %v348 = vld [vmem:[%s4] sm:$0x1]
      %v350 = vlaneseq
      %v351 = vshrl.u32 %v350, 7
      %v352 = vsub.s32 0, %v351
      %v353 = vrot.slane %v348, %v352
      %v371 = vunpack.c.l.b16 %v332
      %v372 = vunpack.c.l.b16 %v333
      %v373 = vunpack.c.l.b16 %v334
      %v374 = vunpack.c.l.b16 %v335
      %v375 = vunpack.c.l.b16 %v336
      %v376 = vunpack.c.l.b16 %v337
      %v377 = vunpack.c.l.b16 %v338
      %v378 = vunpack.c.l.b16 %v339
      %v379 = vunpack.c.l.b16 %v340
      %v380 = vunpack.c.l.b16 %v341
      %v381 = vunpack.c.l.b16 %v342
      %v382 = vunpack.c.l.b16 %v343
      %v383 = vunpack.c.l.b16 %v344
      %v384 = vunpack.c.l.b16 %v345
      %v385 = vunpack.c.l.b16 %v346
      %v386 = vunpack.c.l.b16 %v347
      %v387 = vpack.c.b16 %v372, %v371
      %v388 = vpack.c.b16 %v374, %v373
      %v389 = vpack.c.b16 %v376, %v375
      %v390 = vpack.c.b16 %v378, %v377
      %v391 = vpack.c.b16 %v380, %v379
      %v392 = vpack.c.b16 %v382, %v381
      %v393 = vpack.c.b16 %v384, %v383
      %v394 = vpack.c.b16 %v386, %v385
      %403 = vmatprep.subr.bf16.mxu0 0
      %404 = vmatpush1.bf16.msra.mxu0 %v394
      %405 = vmatprep.subr.bf16.mxu0 0
      %406 = vmatpush1.bf16.msra.mxu0 %v393
      %407 = vmatprep.subr.bf16.mxu0 0
      %408 = vmatpush1.bf16.msra.mxu0 %v392
      %409 = vmatprep.subr.bf16.mxu0 0
      %410 = vmatpush1.bf16.msra.mxu0 %v391
      %411 = vmatprep.subr.bf16.mxu0 0
      %412 = vmatpush1.bf16.msra.mxu0 %v390
      %413 = vmatprep.subr.bf16.mxu0 0
      %414 = vmatpush1.bf16.msra.mxu0 %v389
      %415 = vmatprep.subr.bf16.mxu0 0
      %416 = vmatpush1.bf16.msra.mxu0 %v388
      %417 = vmatprep.subr.bf16.mxu0 0
      %418 = vmatpush1.bf16.msra.mxu0 %v387
      %419 = vmatprep.subr.bf16.mxu0 0
      %420 = vmatpush2.bf16.msra.mxu0 0
      %421 = vmatprep.subr.bf16.mxu0 0
      %422 = vmatpush2.bf16.msra.mxu0 0
      %423 = vmatprep.subr.bf16.mxu0 0
      %424 = vmatpush2.bf16.msra.mxu0 0
      %425 = vmatprep.subr.bf16.mxu0 0
      %426 = vmatpush2.bf16.msra.mxu0 0
      %427 = vmatprep.subr.bf16.mxu0 0
      %428 = vmatpush2.bf16.msra.mxu0 0
      %429 = vmatprep.subr.bf16.mxu0 0
      %430 = vmatpush2.bf16.msra.mxu0 0
      %431 = vmatprep.subr.bf16.mxu0 0
      %432 = vmatpush2.bf16.msra.mxu0 0
      %433 = vmatprep.subr.bf16.mxu0 0
      %434 = vmatpush2.bf16.msra.mxu0 0
      %435 = vmatprep.mubr.bf16.mxu0 0
      %436 = vmatmul.mubr.bf16.gmra.mxu0 %v331
      %v437 = vpop.f32.mrf.mxu0
      %v438 = vadd.f32 %v353, %v437
      %v439 = vpop.f32.mrf.mxu0
      %v440 = vpop.f32.mrf.mxu0
      %v441 = vadd.f32 %v353, %v440
      %v442 = vpop.f32.mrf.mxu0
      %443 = vdwg.mxu0
      %v444 = vmul.f32 %v438, 0.5
      %v445 = vmul.f32 %v441, 0.5
      %v446 = vmul.f32 %v438, 0.044715
      %v447 = vmul.f32 %v441, 0.044715
      %v448 = vmul.f32 %v446, %v438
      %v449 = vmul.f32 %v447, %v441
      %v450 = vmul.f32 %v448, %v438
      %v451 = vmul.f32 %v449, %v441
      %v452 = vadd.f32 %v438, %v450
      %v453 = vadd.f32 %v441, %v451
      %v454 = vmul.f32 %v452, 0.7978846
      %v455 = vmul.f32 %v453, 0.7978846
      %v456 = vtanh.pop %v454
      %v457 = vtanh.pop %v455
      %v458 = vadd.f32 %v456, 1.0
      %v459 = vadd.f32 %v457, 1.0
      %v460 = vmul.f32 %v444, %v458
      %v461 = vmul.f32 %v445, %v459
      %v462 = vpack.c.bf16 %v461, %v460
      %v463 = vld [vmem:[%s5] sm:$0xf]
      %v464 = vld [vmem:[%s5 + $0x4] sm:$0xf]
      %v465 = vld [vmem:[%s5 + $0x8] sm:$0xf]
      %v466 = vld [vmem:[%s5 + $0xc] sm:$0xf]
      %v467 = vld [vmem:[%s5 + $0x10] sm:$0xf]
      %v468 = vld [vmem:[%s5 + $0x14] sm:$0xf]
      %v469 = vld [vmem:[%s5 + $0x18] sm:$0xf]
      %v470 = vld [vmem:[%s5 + $0x1c] sm:$0xf]
      %v471 = vld [vmem:[%s5 + $0x20] sm:$0xf]
      %v472 = vld [vmem:[%s5 + $0x24] sm:$0xf]
      %v473 = vld [vmem:[%s5 + $0x28] sm:$0xf]
      %v474 = vld [vmem:[%s5 + $0x2c] sm:$0xf]
      %v475 = vld [vmem:[%s5 + $0x30] sm:$0xf]
      %v476 = vld [vmem:[%s5 + $0x34] sm:$0xf]
      %v477 = vld [vmem:[%s5 + $0x38] sm:$0xf]
      %v478 = vld [vmem:[%s5 + $0x3c] sm:$0xf]
      %v479 = vld [vmem:[%s6] sm:$0x1]
      %v481 = vlaneseq
      %v482 = vshrl.u32 %v481, 7
      %v483 = vsub.s32 0, %v482
      %v484 = vrot.slane %v479, %v483
      %v502 = vunpack.c.l.b16 %v463
      %v503 = vunpack.c.l.b16 %v464
      %v504 = vunpack.c.l.b16 %v465
      %v505 = vunpack.c.l.b16 %v466
      %v506 = vunpack.c.l.b16 %v467
      %v507 = vunpack.c.l.b16 %v468
      %v508 = vunpack.c.l.b16 %v469
      %v509 = vunpack.c.l.b16 %v470
      %v510 = vunpack.c.l.b16 %v471
      %v511 = vunpack.c.l.b16 %v472
      %v512 = vunpack.c.l.b16 %v473
      %v513 = vunpack.c.l.b16 %v474
      %v514 = vunpack.c.l.b16 %v475
      %v515 = vunpack.c.l.b16 %v476
      %v516 = vunpack.c.l.b16 %v477
      %v517 = vunpack.c.l.b16 %v478
      %v518 = vpack.c.b16 %v503, %v502
      %v519 = vpack.c.b16 %v505, %v504
      %v520 = vpack.c.b16 %v507, %v506
      %v521 = vpack.c.b16 %v509, %v508
      %v522 = vpack.c.b16 %v511, %v510
      %v523 = vpack.c.b16 %v513, %v512
      %v524 = vpack.c.b16 %v515, %v514
      %v525 = vpack.c.b16 %v517, %v516
      %534 = vmatprep.subr.bf16.mxu0 0
      %535 = vmatpush1.bf16.msra.mxu0 %v525
      %536 = vmatprep.subr.bf16.mxu0 0
      %537 = vmatpush1.bf16.msra.mxu0 %v524
      %538 = vmatprep.subr.bf16.mxu0 0
      %539 = vmatpush1.bf16.msra.mxu0 %v523
      %540 = vmatprep.subr.bf16.mxu0 0
      %541 = vmatpush1.bf16.msra.mxu0 %v522
      %542 = vmatprep.subr.bf16.mxu0 0
      %543 = vmatpush1.bf16.msra.mxu0 %v521
      %544 = vmatprep.subr.bf16.mxu0 0
      %545 = vmatpush1.bf16.msra.mxu0 %v520
      %546 = vmatprep.subr.bf16.mxu0 0
      %547 = vmatpush1.bf16.msra.mxu0 %v519
      %548 = vmatprep.subr.bf16.mxu0 0
      %549 = vmatpush1.bf16.msra.mxu0 %v518
      %550 = vmatprep.subr.bf16.mxu0 0
      %551 = vmatpush2.bf16.msra.mxu0 0
      %552 = vmatprep.subr.bf16.mxu0 0
      %553 = vmatpush2.bf16.msra.mxu0 0
      %554 = vmatprep.subr.bf16.mxu0 0
      %555 = vmatpush2.bf16.msra.mxu0 0
      %556 = vmatprep.subr.bf16.mxu0 0
      %557 = vmatpush2.bf16.msra.mxu0 0
      %558 = vmatprep.subr.bf16.mxu0 0
      %559 = vmatpush2.bf16.msra.mxu0 0
      %560 = vmatprep.subr.bf16.mxu0 0
      %561 = vmatpush2.bf16.msra.mxu0 0
      %562 = vmatprep.subr.bf16.mxu0 0
      %563 = vmatpush2.bf16.msra.mxu0 0
      %564 = vmatprep.subr.bf16.mxu0 0
      %565 = vmatpush2.bf16.msra.mxu0 0
      %566 = vmatprep.mubr.bf16.mxu0 0
      %567 = vmatmul.mubr.bf16.gmra.mxu0 %v462
      %v568 = vpop.f32.mrf.mxu0
      %v569 = vadd.f32 %v484, %v568
      %v570 = vpop.f32.mrf.mxu0
      %v571 = vpop.f32.mrf.mxu0
      %v572 = vadd.f32 %v484, %v571
      %v573 = vpop.f32.mrf.mxu0
      %574 = vdwg.mxu0
      %v575 = vadd.f32 %v283, %v569
      %v576 = vadd.f32 %v284, %v572
      %577 = vst [vmem:[%s280] sm:$0xff] %v575
      %578 = vst [vmem:[%s280 + $0x8] sm:$0xff] %v576
      %s579 = smul.u32 2, %s18
      %p580 = scmp.lt.s32.totalorder %s579, 3
      %s581 = scalar_select %p580, %s579, 3
      %s582 = smul.addr %s581, 8
      %s583 = scalar_lea.vmem %s7, %s582
      // Predicated region
      $region49: #{_lambda_.5} parent=47 // pred_check
        %p584 = pneg %p188
      $region50: #{_lambda_.5} parent=47 // pred_check_branch
        %586 = sbr.rel (%p584) target = $region52
      $region51: #{_lambda_.5} parent=47 // pred_region
        %s587 = smul.u32 2, %s18
      $region52: #{_lambda_.5} parent=47 // pred_fallthru
        _
    $region48: #{_lambda_.5} parent=5 // pred_fallthru
      _
    %p588 = scmp.le.s32.totalorder 2, %s13
    // Predicated region
    $region53: #{_lambda_.5} parent=5 // pred_check
      %p589 = pneg %p588
    $region54: #{_lambda_.5} parent=5 // pred_check_branch
      %591 = sbr.rel (%p589) target = $region56
    $region55: #{_lambda_.5} parent=5 // pred_region
      %s592 = ssub.s32 %s13, 2
      // Predicated region
      $region57: #{_lambda_.5} parent=55 // pred_check
        %p593 = pneg %p194
      $region58: #{_lambda_.5} parent=55 // pred_check_branch
        %595 = sbr.rel (%p593) target = $region60
      $region59: #{_lambda_.5} parent=55 // pred_region
        %s596 = smul.u32 2, %s19
        %p597 = scmp.lt.s32.totalorder %s596, 3
        %s598 = scalar_select %p597, %s596, 3
        %s599 = smul.addr %s598, 8
        %s600 = scalar_lea.vmem %s7, %s599
      $region60: #{_lambda_.5} parent=55 // pred_fallthru
        _
    $region56: #{_lambda_.5} parent=5 // pred_fallthru
      _
  $region6: #{_lambda_.5} parent=0 // loop_footer
    %s17 = sadd.s32 1, %s13
  $region7: #{_lambda_.5} parent=0 // loop_footer_branch
    %12 = sbr.rel target = $region3
  $region8: #{_lambda_.5} parent=0 // loop_exit
    _

// kernel: _lambda_.6
$region0: #{_lambda_.6}
  #allocation0 [shape = 'u32[]', space=smem, size = 0x4, offset = 0x4, fixed_abs, tag = 'smem constant byte address 0x4 - core index']
  #allocation1 [shape = 'u32[144,128]{1,0:T(1,128)}', space=vmem, size = 0x12000, scoped, tag = 'internal scratch']
  %s0 = inlined_call_operand.vmem [shape: f32[8,128], index: 0, kind: input, shape index: {}]
  %s1 = inlined_call_operand.vmem [shape: f32[1,128], index: 1, kind: input, shape index: {}]
  %s2 = inlined_call_operand.vmem [shape: f32[1,128], index: 2, kind: input, shape index: {}]
  %s3 = inlined_call_operand.vmem [shape: bf16[128,128], index: 3, kind: input, shape index: {}]
  %s4 = inlined_call_operand.vmem [shape: f32[1,128], index: 4, kind: input, shape index: {}]
  %s5 = inlined_call_operand.vmem [shape: bf16[128,128], index: 5, kind: input, shape index: {}]
  %s6 = inlined_call_operand.vmem [shape: f32[1,128], index: 6, kind: input, shape index: {}]
  %s7 = inlined_call_operand.vmem [shape: f32[8,128], index: 7, kind: output, shape index: {}]
  %s8 = sld [smem:[#allocation0]]
  $region38: #{_lambda_.6} parent=0
    _
  %s10 = ssub.s32 1, %s8
  %s11 = scalar_select 0, %s10, %s8
  // Predicated region
  $region2: #{_lambda_.6} parent=0 // pred_check
    _
  $region3: #{_lambda_.6} parent=0 // pred_check_branch
    %13 = sbr.rel (0) target = $region5
  $region4: #{_lambda_.6} parent=0 // pred_region
    _
  $region5: #{_lambda_.6} parent=0 // pred_fallthru
    _
  // Predicated region
  $region6: #{_lambda_.6} parent=0 // pred_check
    _
  $region7: #{_lambda_.6} parent=0 // pred_check_branch
    %15 = sbr.rel (0) target = $region9
  $region8: #{_lambda_.6} parent=0 // pred_region
    _
  $region9: #{_lambda_.6} parent=0 // pred_fallthru
    _
  // Predicated region
  $region10: #{_lambda_.6} parent=0 // pred_check
    _
  $region11: #{_lambda_.6} parent=0 // pred_check_branch
    %17 = sbr.rel (0) target = $region13
  $region12: #{_lambda_.6} parent=0 // pred_region
    _
  $region13: #{_lambda_.6} parent=0 // pred_fallthru
    _
  // Predicated region
  $region14: #{_lambda_.6} parent=0 // pred_check
    _
  $region15: #{_lambda_.6} parent=0 // pred_check_branch
    %19 = sbr.rel (0) target = $region17
  $region16: #{_lambda_.6} parent=0 // pred_region
    _
  $region17: #{_lambda_.6} parent=0 // pred_fallthru
    _
  // Predicated region
  $region18: #{_lambda_.6} parent=0 // pred_check
    _
  $region19: #{_lambda_.6} parent=0 // pred_check_branch
    %21 = sbr.rel (0) target = $region21
  $region20: #{_lambda_.6} parent=0 // pred_region
    _
  $region21: #{_lambda_.6} parent=0 // pred_fallthru
    _
  // Predicated region
  $region22: #{_lambda_.6} parent=0 // pred_check
    _
  $region23: #{_lambda_.6} parent=0 // pred_check_branch
    %23 = sbr.rel (0) target = $region25
  $region24: #{_lambda_.6} parent=0 // pred_region
    _
  $region25: #{_lambda_.6} parent=0 // pred_fallthru
    _
  // Predicated region
  $region26: #{_lambda_.6} parent=0 // pred_check
    _
  $region27: #{_lambda_.6} parent=0 // pred_check_branch
    %25 = sbr.rel (0) target = $region29
  $region28: #{_lambda_.6} parent=0 // pred_region
    _
  $region29: #{_lambda_.6} parent=0 // pred_fallthru
    _
  %v27 = vld [vmem:[%s0] sm:$0xff]
  %28 = vadd.xlane.f32.xlu0 %v27
  %v29 = vpop.xlane.xlu0 %28
  %v30 = vmul.f32 %v27, %v27
  %31 = vadd.xlane.f32.xlu0 %v30
  %v32 = vpop.xlane.xlu0 %31
  %v33 = vmul.f32 %v29, 0.015625
  %v34 = vmul.f32 %v32, 0.015625
  %v35 = vmul.f32 %v33, %v33
  %v36 = vsub.f32 %v34, %v35
  %v37 = vmax.f32 %v36, 0.0
  %v38 = vsub.f32 %v27, %v33
  %v39 = vadd.f32 %v37, 1e-05
  %v40 = vrsqrt.pop %v39
  %v41 = vmul.f32 %v38, %v40
  %v42 = vld [vmem:[%s1] sm:$0x1]
  %v44 = vlaneseq
  %v45 = vshrl.u32 %v44, 7
  %v46 = vsub.s32 0, %v45
  %v47 = vrot.slane %v42, %v46
  %v49 = vmul.f32 %v41, %v47
  %v50 = vld [vmem:[%s2] sm:$0x1]
  %v52 = vlaneseq
  %v53 = vshrl.u32 %v52, 7
  %v54 = vsub.s32 0, %v53
  %v55 = vrot.slane %v50, %v54
  %v57 = vadd.f32 %v49, %v55
  %v58 = vpack.c.bf16 %v57, %v57
  %v59 = vld [vmem:[%s3] sm:$0xf]
  %v60 = vld [vmem:[%s3 + $0x4] sm:$0xf]
  %v61 = vld [vmem:[%s3 + $0x8] sm:$0xf]
  %v62 = vld [vmem:[%s3 + $0xc] sm:$0xf]
  %v63 = vld [vmem:[%s3 + $0x10] sm:$0xf]
  %v64 = vld [vmem:[%s3 + $0x14] sm:$0xf]
  %v65 = vld [vmem:[%s3 + $0x18] sm:$0xf]
  %v66 = vld [vmem:[%s3 + $0x1c] sm:$0xf]
  %v67 = vld [vmem:[%s3 + $0x20] sm:$0xf]
  %v68 = vld [vmem:[%s3 + $0x24] sm:$0xf]
  %v69 = vld [vmem:[%s3 + $0x28] sm:$0xf]
  %v70 = vld [vmem:[%s3 + $0x2c] sm:$0xf]
  %v71 = vld [vmem:[%s3 + $0x30] sm:$0xf]
  %v72 = vld [vmem:[%s3 + $0x34] sm:$0xf]
  %v73 = vld [vmem:[%s3 + $0x38] sm:$0xf]
  %v74 = vld [vmem:[%s3 + $0x3c] sm:$0xf]
  %v75 = vld [vmem:[%s4] sm:$0x1]
  %v77 = vlaneseq
  %v78 = vshrl.u32 %v77, 7
  %v79 = vsub.s32 0, %v78
  %v80 = vrot.slane %v75, %v79
  %v98 = vunpack.c.l.b16 %v59
  %v99 = vunpack.c.l.b16 %v60
  %v100 = vunpack.c.l.b16 %v61
  %v101 = vunpack.c.l.b16 %v62
  %v102 = vunpack.c.l.b16 %v63
  %v103 = vunpack.c.l.b16 %v64
  %v104 = vunpack.c.l.b16 %v65
  %v105 = vunpack.c.l.b16 %v66
  %v106 = vunpack.c.l.b16 %v67
  %v107 = vunpack.c.l.b16 %v68
  %v108 = vunpack.c.l.b16 %v69
  %v109 = vunpack.c.l.b16 %v70
  %v110 = vunpack.c.l.b16 %v71
  %v111 = vunpack.c.l.b16 %v72
  %v112 = vunpack.c.l.b16 %v73
  %v113 = vunpack.c.l.b16 %v74
  %v114 = vpack.c.b16 %v99, %v98
  %v115 = vpack.c.b16 %v101, %v100
  %v116 = vpack.c.b16 %v103, %v102
  %v117 = vpack.c.b16 %v105, %v104
  %v118 = vpack.c.b16 %v107, %v106
  %v119 = vpack.c.b16 %v109, %v108
  %v120 = vpack.c.b16 %v111, %v110
  %v121 = vpack.c.b16 %v113, %v112
  %130 = vmatprep.subr.bf16.mxu0 0
  %131 = vmatpush1.bf16.msra.mxu0 %v121
  %132 = vmatprep.subr.bf16.mxu0 0
  %133 = vmatpush1.bf16.msra.mxu0 %v120
  %134 = vmatprep.subr.bf16.mxu0 0
  %135 = vmatpush1.bf16.msra.mxu0 %v119
  %136 = vmatprep.subr.bf16.mxu0 0
  %137 = vmatpush1.bf16.msra.mxu0 %v118
  %138 = vmatprep.subr.bf16.mxu0 0
  %139 = vmatpush1.bf16.msra.mxu0 %v117
  %140 = vmatprep.subr.bf16.mxu0 0
  %141 = vmatpush1.bf16.msra.mxu0 %v116
  %142 = vmatprep.subr.bf16.mxu0 0
  %143 = vmatpush1.bf16.msra.mxu0 %v115
  %144 = vmatprep.subr.bf16.mxu0 0
  %145 = vmatpush1.bf16.msra.mxu0 %v114
  %146 = vmatprep.subr.bf16.mxu0 0
  %147 = vmatpush2.bf16.msra.mxu0 0
  %148 = vmatprep.subr.bf16.mxu0 0
  %149 = vmatpush2.bf16.msra.mxu0 0
  %150 = vmatprep.subr.bf16.mxu0 0
  %151 = vmatpush2.bf16.msra.mxu0 0
  %152 = vmatprep.subr.bf16.mxu0 0
  %153 = vmatpush2.bf16.msra.mxu0 0
  %154 = vmatprep.subr.bf16.mxu0 0
  %155 = vmatpush2.bf16.msra.mxu0 0
  %156 = vmatprep.subr.bf16.mxu0 0
  %157 = vmatpush2.bf16.msra.mxu0 0
  %158 = vmatprep.subr.bf16.mxu0 0
  %159 = vmatpush2.bf16.msra.mxu0 0
  %160 = vmatprep.subr.bf16.mxu0 0
  %161 = vmatpush2.bf16.msra.mxu0 0
  %162 = vmatprep.mubr.bf16.mxu0 0
  %163 = vmatmul.mubr.bf16.gmra.mxu0 %v58
  %v164 = vpop.f32.mrf.mxu0
  %v165 = vadd.f32 %v80, %v164
  %v166 = vpop.f32.mrf.mxu0
  %v167 = vpop.f32.mrf.mxu0
  %v168 = vpop.f32.mrf.mxu0
  %169 = vdwg.mxu0
  %v170 = vmul.f32 %v165, 0.5
  %v171 = vmul.f32 %v165, 0.044715
  %v172 = vmul.f32 %v171, %v165
  %v173 = vmul.f32 %v172, %v165
  %v174 = vadd.f32 %v165, %v173
  %v175 = vmul.f32 %v174, 0.7978846
  %v176 = vtanh.pop %v175
  %v177 = vadd.f32 %v176, 1.0
  %v178 = vmul.f32 %v170, %v177
  %v179 = vpack.c.bf16 %v178, %v178
  %v180 = vld [vmem:[%s5] sm:$0xf]
  %v181 = vld [vmem:[%s5 + $0x4] sm:$0xf]
  %v182 = vld [vmem:[%s5 + $0x8] sm:$0xf]
  %v183 = vld [vmem:[%s5 + $0xc] sm:$0xf]
  %v184 = vld [vmem:[%s5 + $0x10] sm:$0xf]
  %v185 = vld [vmem:[%s5 + $0x14] sm:$0xf]
  %v186 = vld [vmem:[%s5 + $0x18] sm:$0xf]
  %v187 = vld [vmem:[%s5 + $0x1c] sm:$0xf]
  %v188 = vld [vmem:[%s5 + $0x20] sm:$0xf]
  %v189 = vld [vmem:[%s5 + $0x24] sm:$0xf]
  %v190 = vld [vmem:[%s5 + $0x28] sm:$0xf]
  %v191 = vld [vmem:[%s5 + $0x2c] sm:$0xf]
  %v192 = vld [vmem:[%s5 + $0x30] sm:$0xf]
  %v193 = vld [vmem:[%s5 + $0x34] sm:$0xf]
  %v194 = vld [vmem:[%s5 + $0x38] sm:$0xf]
  %v195 = vld [vmem:[%s5 + $0x3c] sm:$0xf]
  %v196 = vld [vmem:[%s6] sm:$0x1]
  %v198 = vlaneseq
  %v199 = vshrl.u32 %v198, 7
  %v200 = vsub.s32 0, %v199
  %v201 = vrot.slane %v196, %v200
  %v219 = vunpack.c.l.b16 %v180
  %v220 = vunpack.c.l.b16 %v181
  %v221 = vunpack.c.l.b16 %v182
  %v222 = vunpack.c.l.b16 %v183
  %v223 = vunpack.c.l.b16 %v184
  %v224 = vunpack.c.l.b16 %v185
  %v225 = vunpack.c.l.b16 %v186
  %v226 = vunpack.c.l.b16 %v187
  %v227 = vunpack.c.l.b16 %v188
  %v228 = vunpack.c.l.b16 %v189
  %v229 = vunpack.c.l.b16 %v190
  %v230 = vunpack.c.l.b16 %v191
  %v231 = vunpack.c.l.b16 %v192
  %v232 = vunpack.c.l.b16 %v193
  %v233 = vunpack.c.l.b16 %v194
  %v234 = vunpack.c.l.b16 %v195
  %v235 = vpack.c.b16 %v220, %v219
  %v236 = vpack.c.b16 %v222, %v221
  %v237 = vpack.c.b16 %v224, %v223
  %v238 = vpack.c.b16 %v226, %v225
  %v239 = vpack.c.b16 %v228, %v227
  %v240 = vpack.c.b16 %v230, %v229
  %v241 = vpack.c.b16 %v232, %v231
  %v242 = vpack.c.b16 %v234, %v233
  %251 = vmatprep.subr.bf16.mxu0 0
  %252 = vmatpush1.bf16.msra.mxu0 %v242
  %253 = vmatprep.subr.bf16.mxu0 0
  %254 = vmatpush1.bf16.msra.mxu0 %v241
  %255 = vmatprep.subr.bf16.mxu0 0
  %256 = vmatpush1.bf16.msra.mxu0 %v240
  %257 = vmatprep.subr.bf16.mxu0 0
  %258 = vmatpush1.bf16.msra.mxu0 %v239
  %259 = vmatprep.subr.bf16.mxu0 0
  %260 = vmatpush1.bf16.msra.mxu0 %v238
  %261 = vmatprep.subr.bf16.mxu0 0
  %262 = vmatpush1.bf16.msra.mxu0 %v237
  %263 = vmatprep.subr.bf16.mxu0 0
  %264 = vmatpush1.bf16.msra.mxu0 %v236
  %265 = vmatprep.subr.bf16.mxu0 0
  %266 = vmatpush1.bf16.msra.mxu0 %v235
  %267 = vmatprep.subr.bf16.mxu0 0
  %268 = vmatpush2.bf16.msra.mxu0 0
  %269 = vmatprep.subr.bf16.mxu0 0
  %270 = vmatpush2.bf16.msra.mxu0 0
  %271 = vmatprep.subr.bf16.mxu0 0
  %272 = vmatpush2.bf16.msra.mxu0 0
  %273 = vmatprep.subr.bf16.mxu0 0
  %274 = vmatpush2.bf16.msra.mxu0 0
  %275 = vmatprep.subr.bf16.mxu0 0
  %276 = vmatpush2.bf16.msra.mxu0 0
  %277 = vmatprep.subr.bf16.mxu0 0
  %278 = vmatpush2.bf16.msra.mxu0 0
  %279 = vmatprep.subr.bf16.mxu0 0
  %280 = vmatpush2.bf16.msra.mxu0 0
  %281 = vmatprep.subr.bf16.mxu0 0
  %282 = vmatpush2.bf16.msra.mxu0 0
  %283 = vmatprep.mubr.bf16.mxu0 0
  %284 = vmatmul.mubr.bf16.gmra.mxu0 %v179
  %v285 = vpop.f32.mrf.mxu0
  %v286 = vadd.f32 %v201, %v285
  %v287 = vpop.f32.mrf.mxu0
  %v288 = vpop.f32.mrf.mxu0
  %v289 = vpop.f32.mrf.mxu0
  %290 = vdwg.mxu0
  %v291 = vadd.f32 %v27, %v286
  %292 = vst [vmem:[%s7] sm:$0xff] %v291
  // Predicated region
  $region30: #{_lambda_.6} parent=0 // pred_check
    _
  $region31: #{_lambda_.6} parent=0 // pred_check_branch
    %294 = sbr.rel (0) target = $region33
  $region32: #{_lambda_.6} parent=0 // pred_region
    _
  $region33: #{_lambda_.6} parent=0 // pred_fallthru
    _
  // Predicated region
  $region34: #{_lambda_.6} parent=0 // pred_check
    _
  $region35: #{_lambda_.6} parent=0 // pred_check_branch
    %296 = sbr.rel (0) target = $region37
  $region36: #{_lambda_.6} parent=0 // pred_region
    _
  $region37: #{_lambda_.6} parent=0 // pred_fallthru
    _

// kernel: _lambda_.9
$region0: #{_lambda_.9}
  #allocation0 [shape = 'u32[]', space=smem, size = 0x4, offset = 0x4, fixed_abs, tag = 'smem constant byte address 0x4 - core index']
  #allocation1 [shape = 'u32[144,128]{1,0:T(1,128)}', space=vmem, size = 0x12000, scoped, tag = 'internal scratch']
  %s0 = inlined_call_operand.vmem [shape: f32[8,256], index: 0, kind: input, shape index: {}]
  %s1 = inlined_call_operand.vmem [shape: bf16[256,128], index: 1, kind: input, shape index: {}]
  %s2 = inlined_call_operand.vmem [shape: f32[1,128], index: 2, kind: input, shape index: {}]
  %s3 = inlined_call_operand.vmem [shape: f32[8,128], index: 3, kind: output, shape index: {}]
  %s4 = sld [smem:[#allocation0]]
  $region22: #{_lambda_.9} parent=0
    _
  %s6 = ssub.s32 1, %s4
  %s7 = scalar_select 0, %s6, %s4
  // Predicated region
  $region2: #{_lambda_.9} parent=0 // pred_check
    _
  $region3: #{_lambda_.9} parent=0 // pred_check_branch
    %9 = sbr.rel (0) target = $region5
  $region4: #{_lambda_.9} parent=0 // pred_region
    _
  $region5: #{_lambda_.9} parent=0 // pred_fallthru
    _
  // Predicated region
  $region6: #{_lambda_.9} parent=0 // pred_check
    _
  $region7: #{_lambda_.9} parent=0 // pred_check_branch
    %11 = sbr.rel (0) target = $region9
  $region8: #{_lambda_.9} parent=0 // pred_region
    _
  $region9: #{_lambda_.9} parent=0 // pred_fallthru
    _
  // Predicated region
  $region10: #{_lambda_.9} parent=0 // pred_check
    _
  $region11: #{_lambda_.9} parent=0 // pred_check_branch
    %13 = sbr.rel (0) target = $region13
  $region12: #{_lambda_.9} parent=0 // pred_region
    _
  $region13: #{_lambda_.9} parent=0 // pred_fallthru
    _
  %v15 = vld [vmem:[%s0] sm:$0xff]
  %v16 = vld [vmem:[%s0 + $0x8] sm:$0xff]
  %v17 = vpack.c.bf16 %v15, %v15
  %v18 = vpack.c.bf16 %v16, %v16
  %v19 = vld [vmem:[%s1] sm:$0xf]
  %v20 = vld [vmem:[%s1 + $0x4] sm:$0xf]
  %v21 = vld [vmem:[%s1 + $0x8] sm:$0xf]
  %v22 = vld [vmem:[%s1 + $0xc] sm:$0xf]
  %v23 = vld [vmem:[%s1 + $0x10] sm:$0xf]
  %v24 = vld [vmem:[%s1 + $0x14] sm:$0xf]
  %v25 = vld [vmem:[%s1 + $0x18] sm:$0xf]
  %v26 = vld [vmem:[%s1 + $0x1c] sm:$0xf]
  %v27 = vld [vmem:[%s1 + $0x20] sm:$0xf]
  %v28 = vld [vmem:[%s1 + $0x24] sm:$0xf]
  %v29 = vld [vmem:[%s1 + $0x28] sm:$0xf]
  %v30 = vld [vmem:[%s1 + $0x2c] sm:$0xf]
  %v31 = vld [vmem:[%s1 + $0x30] sm:$0xf]
  %v32 = vld [vmem:[%s1 + $0x34] sm:$0xf]
  %v33 = vld [vmem:[%s1 + $0x38] sm:$0xf]
  %v34 = vld [vmem:[%s1 + $0x3c] sm:$0xf]
  %v35 = vld [vmem:[%s1 + $0x40] sm:$0xf]
  %v36 = vld [vmem:[%s1 + $0x44] sm:$0xf]
  %v37 = vld [vmem:[%s1 + $0x48] sm:$0xf]
  %v38 = vld [vmem:[%s1 + $0x4c] sm:$0xf]
  %v39 = vld [vmem:[%s1 + $0x50] sm:$0xf]
  %v40 = vld [vmem:[%s1 + $0x54] sm:$0xf]
  %v41 = vld [vmem:[%s1 + $0x58] sm:$0xf]
  %v42 = vld [vmem:[%s1 + $0x5c] sm:$0xf]
  %v43 = vld [vmem:[%s1 + $0x60] sm:$0xf]
  %v44 = vld [vmem:[%s1 + $0x64] sm:$0xf]
  %v45 = vld [vmem:[%s1 + $0x68] sm:$0xf]
  %v46 = vld [vmem:[%s1 + $0x6c] sm:$0xf]
  %v47 = vld [vmem:[%s1 + $0x70] sm:$0xf]
  %v48 = vld [vmem:[%s1 + $0x74] sm:$0xf]
  %v49 = vld [vmem:[%s1 + $0x78] sm:$0xf]
  %v50 = vld [vmem:[%s1 + $0x7c] sm:$0xf]
  %v51 = vld [vmem:[%s2] sm:$0x1]
  %v53 = vlaneseq
  %v54 = vshrl.u32 %v53, 7
  %v55 = vsub.s32 0, %v54
  %v56 = vrot.slane %v51, %v55
  %v90 = vunpack.c.l.b16 %v19
  %v91 = vunpack.c.l.b16 %v20
  %v92 = vunpack.c.l.b16 %v21
  %v93 = vunpack.c.l.b16 %v22
  %v94 = vunpack.c.l.b16 %v23
  %v95 = vunpack.c.l.b16 %v24
  %v96 = vunpack.c.l.b16 %v25
  %v97 = vunpack.c.l.b16 %v26
  %v98 = vunpack.c.l.b16 %v27
  %v99 = vunpack.c.l.b16 %v28
  %v100 = vunpack.c.l.b16 %v29
  %v101 = vunpack.c.l.b16 %v30
  %v102 = vunpack.c.l.b16 %v31
  %v103 = vunpack.c.l.b16 %v32
  %v104 = vunpack.c.l.b16 %v33
  %v105 = vunpack.c.l.b16 %v34
  %v106 = vunpack.c.l.b16 %v35
  %v107 = vunpack.c.l.b16 %v36
  %v108 = vunpack.c.l.b16 %v37
  %v109 = vunpack.c.l.b16 %v38
  %v110 = vunpack.c.l.b16 %v39
  %v111 = vunpack.c.l.b16 %v40
  %v112 = vunpack.c.l.b16 %v41
  %v113 = vunpack.c.l.b16 %v42
  %v114 = vunpack.c.l.b16 %v43
  %v115 = vunpack.c.l.b16 %v44
  %v116 = vunpack.c.l.b16 %v45
  %v117 = vunpack.c.l.b16 %v46
  %v118 = vunpack.c.l.b16 %v47
  %v119 = vunpack.c.l.b16 %v48
  %v120 = vunpack.c.l.b16 %v49
  %v121 = vunpack.c.l.b16 %v50
  %v122 = vpack.c.b16 %v91, %v90
  %v123 = vpack.c.b16 %v93, %v92
  %v124 = vpack.c.b16 %v95, %v94
  %v125 = vpack.c.b16 %v97, %v96
  %v126 = vpack.c.b16 %v99, %v98
  %v127 = vpack.c.b16 %v101, %v100
  %v128 = vpack.c.b16 %v103, %v102
  %v129 = vpack.c.b16 %v105, %v104
  %v130 = vpack.c.b16 %v107, %v106
  %v131 = vpack.c.b16 %v109, %v108
  %v132 = vpack.c.b16 %v111, %v110
  %v133 = vpack.c.b16 %v113, %v112
  %v134 = vpack.c.b16 %v115, %v114
  %v135 = vpack.c.b16 %v117, %v116
  %v136 = vpack.c.b16 %v119, %v118
  %v137 = vpack.c.b16 %v121, %v120
  %154 = vmatprep.subr.bf16.mxu0 0
  %155 = vmatpush1.bf16.msra.mxu0 %v129
  %156 = vmatprep.subr.bf16.mxu0 0
  %157 = vmatpush1.bf16.msra.mxu0 %v128
  %158 = vmatprep.subr.bf16.mxu0 0
  %159 = vmatpush1.bf16.msra.mxu0 %v127
  %160 = vmatprep.subr.bf16.mxu0 0
  %161 = vmatpush1.bf16.msra.mxu0 %v126
  %162 = vmatprep.subr.bf16.mxu0 0
  %163 = vmatpush1.bf16.msra.mxu0 %v125
  %164 = vmatprep.subr.bf16.mxu0 0
  %165 = vmatpush1.bf16.msra.mxu0 %v124
  %166 = vmatprep.subr.bf16.mxu0 0
  %167 = vmatpush1.bf16.msra.mxu0 %v123
  %168 = vmatprep.subr.bf16.mxu0 0
  %169 = vmatpush1.bf16.msra.mxu0 %v122
  %170 = vmatprep.subr.bf16.mxu0 0
  %171 = vmatpush2.bf16.msra.mxu0 %v137
  %172 = vmatprep.subr.bf16.mxu0 0
  %173 = vmatpush2.bf16.msra.mxu0 %v136
  %174 = vmatprep.subr.bf16.mxu0 0
  %175 = vmatpush2.bf16.msra.mxu0 %v135
  %176 = vmatprep.subr.bf16.mxu0 0
  %177 = vmatpush2.bf16.msra.mxu0 %v134
  %178 = vmatprep.subr.bf16.mxu0 0
  %179 = vmatpush2.bf16.msra.mxu0 %v133
  %180 = vmatprep.subr.bf16.mxu0 0
  %181 = vmatpush2.bf16.msra.mxu0 %v132
  %182 = vmatprep.subr.bf16.mxu0 0
  %183 = vmatpush2.bf16.msra.mxu0 %v131
  %184 = vmatprep.subr.bf16.mxu0 0
  %185 = vmatpush2.bf16.msra.mxu0 %v130
  %186 = vmatprep.mubr.bf16.mxu0 %v18
  %187 = vmatmul.mubr.bf16.gmra.mxu0 %v17
  %v188 = vpop.f32.mrf.mxu0
  %v189 = vadd.f32 %v56, %v188
  %v190 = vpop.f32.mrf.mxu0
  %v191 = vpop.f32.mrf.mxu0
  %v192 = vpop.f32.mrf.mxu0
  %193 = vdwg.mxu0
  %194 = vst [vmem:[%s3] sm:$0xff] %v189
  // Predicated region
  $region14: #{_lambda_.9} parent=0 // pred_check
    _
  $region15: #{_lambda_.9} parent=0 // pred_check_branch
    %196 = sbr.rel (0) target = $region17
  $region16: #{_lambda_.9} parent=0 // pred_region
    _
  $region17: #{_lambda_.9} parent=0 // pred_fallthru
    _
  // Predicated region
  $region18: #{_lambda_.9} parent=0 // pred_check
    _
  $region19: #{_lambda_.9} parent=0 // pred_check_branch
    %198 = sbr.rel (0) target = $region21
  $region20: #{_lambda_.9} parent=0 // pred_region
    _
  $region21: #{_lambda_.9} parent=0 // pred_fallthru
    _

</llo_original>
